<compile_context>
chip_gen: v7x
topology: tpu7x:2x2x1
jax: 0.10.0
libtpu: 0.0.40
codegen_flags: <defaults>
</compile_context>

<pallas_src>
import math

import jax
import jax.numpy as jnp
import numpy as np
from jax.experimental import pallas as pl
from jax.experimental.pallas import tpu as pltpu

# ---- model hyper-parameters (small, consistent with the module) ----
BATCH = 2
SEQ = 8
D_MODEL = 32
NHEAD = 4
HEAD_DIM = D_MODEL // NHEAD
DIM_FF = 64
EPS = 1e-5  # nn.LayerNorm default
VEC_ROWS = 8
VEC_WIDTH = max(3 * D_MODEL, DIM_FF)


def _rat_encoder_kernel(x_ref, rel_bdt_ref, rel_bd_ref, wqkv_ref, wo_ref,
                        w1_ref, w2_ref, vec_ref, bdm_ref, bss_ref, blk_ref,
                        unf_ref, fold_ref, o_ref):
    """One grid step = BB batch elements: relation-aware MHA + FFN + 2x LN."""
    S, D, Dh, H = SEQ, D_MODEL, HEAD_DIM, NHEAD
    BB = x_ref.shape[0]
    f32 = jnp.float32
    bf = lambda a: a.astype(jnp.bfloat16)  # explicit single-pass MXU precision

    vec = vec_ref[...]
    bqkv = vec[0:1, 0:3 * D]
    bo = vec[1:2, 0:D]
    g1 = vec[2:3, 0:D]
    be1 = vec[3:4, 0:D]
    b1 = vec[4:5, 0:DIM_FF]
    b2 = vec[5:6, 0:D]
    g2 = vec[6:7, 0:D]
    be2 = vec[7:8, 0:D]

    bd_mask = bdm_ref[...]   # (H*S, D)     f32 0/1: head block-diagonal mask
    bs = bss_ref[...]        # (H*S, H*S)   bf16   : per-head-block sum + spread
    blk = blk_ref[...]       # (S, H*S*S)   f32 0/1: query-row block-diag mask
    unfold = unf_ref[...]    # (H*S, H*S*S) bf16   : lane replication of attn
    fold = fold_ref[...]     # (H*S*S, H*S) bf16   : folds masked G to (S, H*S)

    # QKV projection fused over heads AND batch: one (BB*S, D) @ (D, 3D).
    x_rows = [x_ref[b] for b in range(BB)]
    x = x_rows[0] if BB == 1 else jnp.concatenate(x_rows, axis=0)  # (BB*S, D)
    qkv = jnp.dot(bf(x), wqkv_ref[...], preferred_element_type=f32) + bqkv

    scale = 1.0 / math.sqrt(Dh)
    ctx_rows = []
    for b in range(BB):  # static unroll over the (tiny) per-step batch block
        rows = slice(b * S, (b + 1) * S)
        q = qkv[rows, 0:D] * scale        # scale folded into q before the MXU
        k = qkv[rows, D:2 * D]
        v = qkv[rows, 2 * D:3 * D]

        # Block-diagonal K / V operands: sublane tile + constant mask.
        # No per-head lane slices, no transposes.
        k_bd = jnp.concatenate([k] * H, axis=0) * bd_mask      # (H*S, D)
        v_bd = jnp.concatenate([v] * H, axis=0) * bd_mask      # (H*S, D)

        # All heads' content scores in ONE matmul: (S, D) x (H*S, D)^T.
        scores = jax.lax.dot_general(
            bf(q), bf(k_bd), (((1,), (1,)), ((), ())),
            preferred_element_type=f32)                         # (S, H*S)

        # Key-side relation bias (relation is head-shared) in two matmuls:
        #   g_all[i, h*S*S + i'*S + j] = q_h[i] . rel[i', j]; keep i'==i, fold.
        g_all = jnp.dot(bf(q), rel_bdt_ref[b],
                        preferred_element_type=f32)             # (S, H*S*S)
        scores = scores + jnp.dot(bf(g_all * blk), fold,
                                  preferred_element_type=f32)   # (S, H*S)

        # Per-head softmax: the row max is constant within each head's lane
        # block, so it is a valid softmax shift; per-block sums are produced
        # and spread back across the block by one 0/1 matmul; exact reciprocal.
        m = jnp.max(scores, axis=-1, keepdims=True)
        e = jnp.exp(scores - m)
        denom = jnp.dot(bf(e), bs, preferred_element_type=f32)  # (S, H*S)
        attn = e * pl.reciprocal(denom, approx=False)

        # Content context (one matmul) + value-side relation bias (two).
        ctx = jnp.dot(bf(attn), bf(v_bd), preferred_element_type=f32)  # (S, D)
        a_exp = jnp.dot(bf(attn), unfold, preferred_element_type=f32) * blk
        ctx = ctx + jnp.dot(bf(a_exp), rel_bd_ref[b],
                            preferred_element_type=f32)
        ctx_rows.append(ctx)

    ctx = ctx_rows[0] if BB == 1 else jnp.concatenate(ctx_rows, axis=0)

    # Output projection fused over heads AND batch (ctx already lies in the
    # concat_h(ctx_h) layout) -> a single matmul, no accumulation chain.
    z = jnp.dot(bf(ctx), wo_ref[...], preferred_element_type=f32) + bo

    # Residual + LayerNorm1 (dropout1 is identity).
    y1 = x + z
    mu = jnp.mean(y1, axis=-1, keepdims=True)
    var = jnp.mean((y1 - mu) ** 2, axis=-1, keepdims=True)
    y1 = (y1 - mu) * jax.lax.rsqrt(var + EPS) * g1 + be1

    # Feed-forward: linear2(relu(linear1(y1)))  (dropout is identity).
    h1 = jnp.maximum(
        jnp.dot(bf(y1), w1_ref[...], preferred_element_type=f32) + b1, 0.0)
    h2 = jnp.dot(bf(h1), w2_ref[...], preferred_element_type=f32) + b2

    # Residual + LayerNorm2 (dropout2 is identity).
    y2 = y1 + h2
    mu2 = jnp.mean(y2, axis=-1, keepdims=True)
    var2 = jnp.mean((y2 - mu2) ** 2, axis=-1, keepdims=True)
    y2 = (y2 - mu2) * jax.lax.rsqrt(var2 + EPS) * g2 + be2

    for b in range(BB):
        o_ref[b] = y2[b * S:(b + 1) * S, :]


def _build_masks(S, Dh, H):
    """0/1 constants, hoisted out of the kernel and DMA'd once."""
    D = H * Dh
    r = np.arange(H * S)[:, None]
    bd_mask = (r // S == np.arange(D)[None, :] // Dh).astype(np.float32)
    rr = np.arange(H * S)
    bs = (rr[:, None] // S == rr[None, :] // S).astype(np.float32)
    blk = ((np.arange(H * S * S)[None, :] // S) % S
           == np.arange(S)[:, None]).astype(np.float32)
    L = np.arange(H * S * S)[:, None]
    c = np.arange(H * S)[None, :]
    fold = ((L // (S * S) == c // S) & (L % S == c % S)).astype(np.float32)
    unfold = np.ascontiguousarray(fold.T)
    return bd_mask, bs, blk, unfold, fold


def _pack_vectors(params):
    """Pack the 10 bias/gamma/beta vectors into one (8, VEC_WIDTH) array."""
    rows = [
        jnp.concatenate([params["bq"], params["bk"], params["bv"]], axis=1),
        params["bo"], params["g1"], params["be1"],
        params["b1"], params["b2"], params["g2"], params["be2"],
    ]
    rows = [jnp.pad(r, ((0, 0), (0, VEC_WIDTH - r.shape[1]))) for r in rows]
    packed = jnp.concatenate(rows, axis=0)
    assert packed.shape == (VEC_ROWS, VEC_WIDTH)
    return packed


def rat_encoder_layer(sequence, relations, params, batch_per_step=None):
    B, S, D = sequence.shape
    Dh = relations.shape[-1]
    H = D // Dh
    FF = params["w1"].shape[1]
    bf16 = jnp.bfloat16

    if batch_per_step is None:
        try:
            kind = jax.devices()[0].device_kind.lower()
        except Exception:
            kind = ""
        # v7x: 2 TensorCores/chip -> one batch element per core (grid=(B,)).
        # Single-TC v5e/v6e: fold the whole batch into ONE grid step.
        batch_per_step = 1 if "v7" in kind else B
    BB = max(1, min(batch_per_step, B))
    assert B % BB == 0, "batch must be divisible by batch_per_step"

    # Fused projection weight + packed bias/LN vectors (fewer, wider inputs).
    wqkv = jnp.concatenate([params["wq"], params["wk"], params["wv"]], axis=1)
    packed_vec = _pack_vectors(params)

    # Head-block-diagonal relation operands (wrapper-side layout plumbing):
    #   rel_bd[b, h*S*S + c, h*Dh + d] = relations[b, c // S, c % S, d].
    rel2 = relations.reshape(B, S * S, Dh)
    eye = jnp.eye(H, dtype=relations.dtype)
    rel_bd = jnp.einsum("hg,bcd->bhcgd", eye, rel2).reshape(B, H * S * S, H * Dh)
    rel_bdt = rel_bd.transpose(0, 2, 1)          # (B, D, H*S*S)

    bd_mask, bs, blk, unfold, fold = _build_masks(S, Dh, H)

    def const(shape):
        return pl.BlockSpec(shape, lambda b: (0,) * len(shape))

    in_specs = [
        pl.BlockSpec((BB, S, D), lambda b: (b, 0, 0)),              # sequence
        pl.BlockSpec((BB, D, H * S * S), lambda b: (b, 0, 0)),      # rel_bd^T
        pl.BlockSpec((BB, H * S * S, D), lambda b: (b, 0, 0)),      # rel_bd
        const((D, 3 * D)),                                          # wqkv
        const((D, D)),                                              # wo
        const((D, FF)),                                             # w1
        const((FF, D)),                                             # w2
        const((VEC_ROWS, VEC_WIDTH)),                               # vectors
        const((H * S, D)),                                          # bd_mask
        const((H * S, H * S)),                                      # bs
        const((S, H * S * S)),                                      # blk
        const((H * S, H * S * S)),                                  # unfold
        const((H * S * S, H * S)),                                  # fold
    ]

    grid_spec = pltpu.PrefetchScalarGridSpec(
        num_scalar_prefetch=0,
        grid=(B // BB,),
        in_specs=in_specs,
        out_specs=pl.BlockSpec((BB, S, D), lambda b: (b, 0, 0)),
    )

    fn = pl.pallas_call(
        _rat_encoder_kernel,
        out_shape=jax.ShapeDtypeStruct((B, S, D), jnp.float32),
        grid_spec=grid_spec,
        compiler_params=pltpu.CompilerParams(
            dimension_semantics=("parallel",)),
    )
    return fn(sequence,
              rel_bdt.astype(bf16), rel_bd.astype(bf16),
              wqkv.astype(bf16), params["wo"].astype(bf16),
              params["w1"].astype(bf16), params["w2"].astype(bf16),
              packed_vec,
              jnp.asarray(bd_mask), jnp.asarray(bs, dtype=bf16),
              jnp.asarray(blk), jnp.asarray(unfold, dtype=bf16),
              jnp.asarray(fold, dtype=bf16))


# ---------------- pure-JAX reference (same math, no Pallas) ----------------
def _layer_norm(x, g, b):
    mu = jnp.mean(x, axis=-1, keepdims=True)
    var = jnp.mean((x - mu) ** 2, axis=-1, keepdims=True)
    return (x - mu) * jax.lax.rsqrt(var + EPS) * g + b


def rat_encoder_layer_ref(x, rel, p):
    B, S, D = x.shape
    q = x @ p["wq"] + p["bq"]
    k = x @ p["wk"] + p["bk"]
    v = x @ p["wv"] + p["bv"]
    qh = q.reshape(B, S, NHEAD, HEAD_DIM).transpose(0, 2, 1, 3)
    kh = k.reshape(B, S, NHEAD, HEAD_DIM).transpose(0, 2, 1, 3)
    vh = v.reshape(B, S, NHEAD, HEAD_DIM).transpose(0, 2, 1, 3)
    scores = jnp.einsum("bhid,bhjd->bhij", qh, kh)
    scores = scores + jnp.einsum("bhid,bijd->bhij", qh, rel)
    scores = scores / math.sqrt(HEAD_DIM)
    attn = jax.nn.softmax(scores, axis=-1)
    ctx = jnp.einsum("bhij,bhjd->bhid", attn, vh)
    ctx = ctx + jnp.einsum("bhij,bijd->bhid", attn, rel)
    z = ctx.transpose(0, 2, 1, 3).reshape(B, S, D) @ p["wo"] + p["bo"]
    y1 = _layer_norm(x + z, p["g1"], p["be1"])
    h = jnp.maximum(y1 @ p["w1"] + p["b1"], 0.0)
    y2 = _layer_norm(y1 + (h @ p["w2"] + p["b2"]), p["g2"], p["be2"])
    return y2


def init_params(key):
    ks = jax.random.split(key, 20)
    n = lambda k, shape, s: (s * jax.random.normal(k, shape)).astype(jnp.float32)
    return {
        "wq": n(ks[0], (D_MODEL, D_MODEL), 0.1), "bq": n(ks[1], (1, D_MODEL), 0.02),
        "wk": n(ks[2], (D_MODEL, D_MODEL), 0.1), "bk": n(ks[3], (1, D_MODEL), 0.02),
        "wv": n(ks[4], (D_MODEL, D_MODEL), 0.1), "bv": n(ks[5], (1, D_MODEL), 0.02),
        "wo": n(ks[6], (D_MODEL, D_MODEL), 0.1), "bo": n(ks[7], (1, D_MODEL), 0.02),
        "g1": 1.0 + n(ks[8], (1, D_MODEL), 0.05), "be1": n(ks[9], (1, D_MODEL), 0.05),
        "w1": n(ks[10], (D_MODEL, DIM_FF), 0.1), "b1": n(ks[11], (1, DIM_FF), 0.02),
        "w2": n(ks[12], (DIM_FF, D_MODEL), 0.1), "b2": n(ks[13], (1, D_MODEL), 0.02),
        "g2": 1.0 + n(ks[14], (1, D_MODEL), 0.05), "be2": n(ks[15], (1, D_MODEL), 0.05),
    }


if __name__ == "__main__":
    key = jax.random.PRNGKey(0)
    k_x, k_r, k_p = jax.random.split(key, 3)

    sequence = jax.random.normal(k_x, (BATCH, SEQ, D_MODEL), dtype=jnp.float32)
    relations = 0.1 * jax.random.normal(
        k_r, (BATCH, SEQ, SEQ, HEAD_DIM), dtype=jnp.float32)
    params = init_params(k_p)

    out = jax.block_until_ready(rat_encoder_layer(sequence, relations, params))
    ref = jax.block_until_ready(rat_encoder_layer_ref(sequence, relations, params))

    # bf16 MXU operands (same class of rounding as the reference's default
    # TPU matmul precision); softmax uses the exact reciprocal.
    np.testing.assert_allclose(np.asarray(out), np.asarray(ref),
                               rtol=5e-3, atol=5e-3)
    print("KERNEL_OK")
</pallas_src>

<mosaic_0001>
module attributes {stable_mosaic.version = 11 : i64} {
  func.func @_rat_encoder_kernel(%arg0: i32, %arg1: memref<2x8x32xf32, #tpu.memory_space<vmem>>, %arg2: memref<2x32x256xbf16, #tpu.memory_space<vmem>>, %arg3: memref<2x256x32xbf16, #tpu.memory_space<vmem>>, %arg4: memref<32x96xbf16, #tpu.memory_space<vmem>>, %arg5: memref<32x32xbf16, #tpu.memory_space<vmem>>, %arg6: memref<32x64xbf16, #tpu.memory_space<vmem>>, %arg7: memref<64x32xbf16, #tpu.memory_space<vmem>>, %arg8: memref<8x96xf32, #tpu.memory_space<vmem>>, %arg9: memref<32x32xf32, #tpu.memory_space<vmem>>, %arg10: memref<32x32xbf16, #tpu.memory_space<vmem>>, %arg11: memref<8x256xf32, #tpu.memory_space<vmem>>, %arg12: memref<32x256xbf16, #tpu.memory_space<vmem>>, %arg13: memref<256x32xbf16, #tpu.memory_space<vmem>>, %arg14: memref<2x8x32xf32, #tpu.memory_space<vmem>>) attributes {dimension_semantics = [#tpu.dimension_semantics<parallel>], iteration_bounds = array<i64: 1>, scalar_prefetch = 0 : i64, scratch_operands = 0 : i64, tpu.core_type = #tpu.core_type<tc>, window_params = [{transform_indices = @transform_0, window_bounds = array<i64: 2, 8, 32>}, {transform_indices = @transform_1, window_bounds = array<i64: 2, 32, 256>}, {transform_indices = @transform_2, window_bounds = array<i64: 2, 256, 32>}, {pipeline_mode = #tpu.pipeline_mode<synchronous>, transform_indices = @transform_3, window_bounds = array<i64: 32, 96>}, {pipeline_mode = #tpu.pipeline_mode<synchronous>, transform_indices = @transform_4, window_bounds = array<i64: 32, 32>}, {pipeline_mode = #tpu.pipeline_mode<synchronous>, transform_indices = @transform_5, window_bounds = array<i64: 32, 64>}, {pipeline_mode = #tpu.pipeline_mode<synchronous>, transform_indices = @transform_6, window_bounds = array<i64: 64, 32>}, {pipeline_mode = #tpu.pipeline_mode<synchronous>, transform_indices = @transform_7, window_bounds = array<i64: 8, 96>}, {pipeline_mode = #tpu.pipeline_mode<synchronous>, transform_indices = @transform_8, window_bounds = array<i64: 32, 32>}, {pipeline_mode = #tpu.pipeline_mode<synchronous>, transform_indices = @transform_9, window_bounds = array<i64: 32, 32>}, {pipeline_mode = #tpu.pipeline_mode<synchronous>, transform_indices = @transform_10, window_bounds = array<i64: 8, 256>}, {pipeline_mode = #tpu.pipeline_mode<synchronous>, transform_indices = @transform_11, window_bounds = array<i64: 32, 256>}, {pipeline_mode = #tpu.pipeline_mode<synchronous>, transform_indices = @transform_12, window_bounds = array<i64: 256, 32>}, {transform_indices = @transform_13, window_bounds = array<i64: 2, 8, 32>}]} {
    %c0 = arith.constant 0 : index
    %c0_0 = arith.constant 0 : index
    %0 = vector.load %arg8[%c0, %c0_0] : memref<8x96xf32, #tpu.memory_space<vmem>>, vector<8x96xf32>
    %1 = vector.extract_strided_slice %0 {offsets = [0, 0], sizes = [1, 96], strides = [1, 1]} : vector<8x96xf32> to vector<1x96xf32>
    %2 = vector.extract_strided_slice %0 {offsets = [1, 0], sizes = [1, 32], strides = [1, 1]} : vector<8x96xf32> to vector<1x32xf32>
    %3 = vector.extract_strided_slice %0 {offsets = [2, 0], sizes = [1, 32], strides = [1, 1]} : vector<8x96xf32> to vector<1x32xf32>
    %4 = vector.extract_strided_slice %0 {offsets = [3, 0], sizes = [1, 32], strides = [1, 1]} : vector<8x96xf32> to vector<1x32xf32>
    %5 = vector.extract_strided_slice %0 {offsets = [4, 0], sizes = [1, 64], strides = [1, 1]} : vector<8x96xf32> to vector<1x64xf32>
    %6 = vector.extract_strided_slice %0 {offsets = [5, 0], sizes = [1, 32], strides = [1, 1]} : vector<8x96xf32> to vector<1x32xf32>
    %7 = vector.extract_strided_slice %0 {offsets = [6, 0], sizes = [1, 32], strides = [1, 1]} : vector<8x96xf32> to vector<1x32xf32>
    %8 = vector.extract_strided_slice %0 {offsets = [7, 0], sizes = [1, 32], strides = [1, 1]} : vector<8x96xf32> to vector<1x32xf32>
    %c0_1 = arith.constant 0 : index
    %c0_2 = arith.constant 0 : index
    %9 = vector.load %arg9[%c0_1, %c0_2] : memref<32x32xf32, #tpu.memory_space<vmem>>, vector<32x32xf32>
    %c0_3 = arith.constant 0 : index
    %c0_4 = arith.constant 0 : index
    %10 = vector.load %arg10[%c0_3, %c0_4] : memref<32x32xbf16, #tpu.memory_space<vmem>>, vector<32x32xbf16>
    %c0_5 = arith.constant 0 : index
    %c0_6 = arith.constant 0 : index
    %11 = vector.load %arg11[%c0_5, %c0_6] : memref<8x256xf32, #tpu.memory_space<vmem>>, vector<8x256xf32>
    %c0_7 = arith.constant 0 : index
    %c0_8 = arith.constant 0 : index
    %12 = vector.load %arg12[%c0_7, %c0_8] : memref<32x256xbf16, #tpu.memory_space<vmem>>, vector<32x256xbf16>
    %c0_9 = arith.constant 0 : index
    %c0_10 = arith.constant 0 : index
    %13 = vector.load %arg13[%c0_9, %c0_10] : memref<256x32xbf16, #tpu.memory_space<vmem>>, vector<256x32xbf16>
    %c0_11 = arith.constant 0 : index
    %c0_12 = arith.constant 0 : index
    %c0_13 = arith.constant 0 : index
    %14 = vector.load %arg1[%c0_11, %c0_12, %c0_13] : memref<2x8x32xf32, #tpu.memory_space<vmem>>, vector<1x8x32xf32>
    %15 = vector.shape_cast %14 : vector<1x8x32xf32> to vector<8x32xf32>
    %c1 = arith.constant 1 : index
    %c0_14 = arith.constant 0 : index
    %c0_15 = arith.constant 0 : index
    %16 = vector.load %arg1[%c1, %c0_14, %c0_15] : memref<2x8x32xf32, #tpu.memory_space<vmem>>, vector<1x8x32xf32>
    %17 = vector.shape_cast %16 : vector<1x8x32xf32> to vector<8x32xf32>
    %18 = tpu.concatenate %15, %17 in 0 : vector<8x32xf32>, vector<8x32xf32> -> vector<16x32xf32>
    %19 = arith.truncf %18 : vector<16x32xf32> to vector<16x32xbf16>
    %c0_16 = arith.constant 0 : index
    %c0_17 = arith.constant 0 : index
    %20 = vector.load %arg4[%c0_16, %c0_17] : memref<32x96xbf16, #tpu.memory_space<vmem>>, vector<32x96xbf16>
    %cst = arith.constant dense<0.000000e+00> : vector<16x96xf32>
    %21 = tpu.matmul %19, %20, %cst {dimension_numbers = #tpu.dot_dimension_numbers<[1], [0], [0], [1], [0, 0, 1, 1], [], []>} : vector<16x32xbf16>, vector<32x96xbf16>, vector<16x96xf32> -> vector<16x96xf32>
    %22 = vector.broadcast %1 : vector<1x96xf32> to vector<16x96xf32>
    %23 = arith.addf %21, %22 : vector<16x96xf32>
    %24 = vector.extract_strided_slice %23 {offsets = [0, 0], sizes = [8, 32], strides = [1, 1]} : vector<16x96xf32> to vector<8x32xf32>
    %cst_18 = arith.constant 0.353553385 : f32
    %25 = vector.broadcast %cst_18 : f32 to vector<8x32xf32>
    %26 = arith.mulf %24, %25 : vector<8x32xf32>
    %27 = vector.extract_strided_slice %23 {offsets = [0, 32], sizes = [8, 32], strides = [1, 1]} : vector<16x96xf32> to vector<8x32xf32>
    %28 = vector.extract_strided_slice %23 {offsets = [0, 64], sizes = [8, 32], strides = [1, 1]} : vector<16x96xf32> to vector<8x32xf32>
    %29 = tpu.concatenate %27, %27, %27, %27 in 0 : vector<8x32xf32>, vector<8x32xf32>, vector<8x32xf32>, vector<8x32xf32> -> vector<32x32xf32>
    %30 = arith.mulf %29, %9 : vector<32x32xf32>
    %31 = tpu.concatenate %28, %28, %28, %28 in 0 : vector<8x32xf32>, vector<8x32xf32>, vector<8x32xf32>, vector<8x32xf32> -> vector<32x32xf32>
    %32 = arith.mulf %31, %9 : vector<32x32xf32>
    %33 = arith.truncf %26 : vector<8x32xf32> to vector<8x32xbf16>
    %34 = arith.truncf %30 : vector<32x32xf32> to vector<32x32xbf16>
    %cst_19 = arith.constant dense<0.000000e+00> : vector<8x32xf32>
    %35 = tpu.matmul %33, %34, %cst_19 {dimension_numbers = #tpu.dot_dimension_numbers<[1], [1], [0], [0], [0, 0, 1, 0], [], []>} : vector<8x32xbf16>, vector<32x32xbf16>, vector<8x32xf32> -> vector<8x32xf32>
    %36 = arith.truncf %26 : vector<8x32xf32> to vector<8x32xbf16>
    %c0_20 = arith.constant 0 : index
    %c0_21 = arith.constant 0 : index
    %c0_22 = arith.constant 0 : index
    %37 = vector.load %arg2[%c0_20, %c0_21, %c0_22] : memref<2x32x256xbf16, #tpu.memory_space<vmem>>, vector<1x32x256xbf16>
    %38 = vector.shape_cast %37 : vector<1x32x256xbf16> to vector<32x256xbf16>
    %cst_23 = arith.constant dense<0.000000e+00> : vector<8x256xf32>
    %39 = tpu.matmul %36, %38, %cst_23 {dimension_numbers = #tpu.dot_dimension_numbers<[1], [0], [0], [1], [0, 0, 1, 1], [], []>} : vector<8x32xbf16>, vector<32x256xbf16>, vector<8x256xf32> -> vector<8x256xf32>
    %40 = arith.mulf %39, %11 : vector<8x256xf32>
    %41 = arith.truncf %40 : vector<8x256xf32> to vector<8x256xbf16>
    %cst_24 = arith.constant dense<0.000000e+00> : vector<8x32xf32>
    %42 = tpu.matmul %41, %13, %cst_24 {dimension_numbers = #tpu.dot_dimension_numbers<[1], [0], [0], [1], [0, 0, 1, 1], [], []>} : vector<8x256xbf16>, vector<256x32xbf16>, vector<8x32xf32> -> vector<8x32xf32>
    %43 = arith.addf %35, %42 : vector<8x32xf32>
    %cst_25 = arith.constant dense<0xFF800000> : vector<8xf32>
    %44 = vector.multi_reduction <maximumf>, %43, %cst_25 [1] : vector<8x32xf32> to vector<8xf32>
    %45 = vector.shape_cast %44 : vector<8xf32> to vector<8x1xf32>
    %46 = vector.broadcast %45 : vector<8x1xf32> to vector<8x32xf32>
    %47 = arith.subf %43, %46 : vector<8x32xf32>
    %48 = math.exp %47 : vector<8x32xf32>
    %49 = arith.truncf %48 : vector<8x32xf32> to vector<8x32xbf16>
    %cst_26 = arith.constant dense<0.000000e+00> : vector<8x32xf32>
    %50 = tpu.matmul %49, %10, %cst_26 {dimension_numbers = #tpu.dot_dimension_numbers<[1], [0], [0], [1], [0, 0, 1, 1], [], []>} : vector<8x32xbf16>, vector<32x32xbf16>, vector<8x32xf32> -> vector<8x32xf32>
    %51 = tpu.reciprocal %50 : vector<8x32xf32> -> vector<8x32xf32>
    %52 = arith.mulf %48, %51 : vector<8x32xf32>
    %53 = arith.truncf %52 : vector<8x32xf32> to vector<8x32xbf16>
    %54 = arith.truncf %32 : vector<32x32xf32> to vector<32x32xbf16>
    %cst_27 = arith.constant dense<0.000000e+00> : vector<8x32xf32>
    %55 = tpu.matmul %53, %54, %cst_27 {dimension_numbers = #tpu.dot_dimension_numbers<[1], [0], [0], [1], [0, 0, 1, 1], [], []>} : vector<8x32xbf16>, vector<32x32xbf16>, vector<8x32xf32> -> vector<8x32xf32>
    %56 = arith.truncf %52 : vector<8x32xf32> to vector<8x32xbf16>
    %cst_28 = arith.constant dense<0.000000e+00> : vector<8x256xf32>
    %57 = tpu.matmul %56, %12, %cst_28 {dimension_numbers = #tpu.dot_dimension_numbers<[1], [0], [0], [1], [0, 0, 1, 1], [], []>} : vector<8x32xbf16>, vector<32x256xbf16>, vector<8x256xf32> -> vector<8x256xf32>
    %58 = arith.mulf %57, %11 : vector<8x256xf32>
    %59 = arith.truncf %58 : vector<8x256xf32> to vector<8x256xbf16>
    %c0_29 = arith.constant 0 : index
    %c0_30 = arith.constant 0 : index
    %c0_31 = arith.constant 0 : index
    %60 = vector.load %arg3[%c0_29, %c0_30, %c0_31] : memref<2x256x32xbf16, #tpu.memory_space<vmem>>, vector<1x256x32xbf16>
    %61 = vector.shape_cast %60 : vector<1x256x32xbf16> to vector<256x32xbf16>
    %cst_32 = arith.constant dense<0.000000e+00> : vector<8x32xf32>
    %62 = tpu.matmul %59, %61, %cst_32 {dimension_numbers = #tpu.dot_dimension_numbers<[1], [0], [0], [1], [0, 0, 1, 1], [], []>} : vector<8x256xbf16>, vector<256x32xbf16>, vector<8x32xf32> -> vector<8x32xf32>
    %63 = arith.addf %55, %62 : vector<8x32xf32>
    %64 = vector.extract_strided_slice %23 {offsets = [8, 0], sizes = [8, 32], strides = [1, 1]} : vector<16x96xf32> to vector<8x32xf32>
    %cst_33 = arith.constant 0.353553385 : f32
    %65 = vector.broadcast %cst_33 : f32 to vector<8x32xf32>
    %66 = arith.mulf %64, %65 : vector<8x32xf32>
    %67 = vector.extract_strided_slice %23 {offsets = [8, 32], sizes = [8, 32], strides = [1, 1]} : vector<16x96xf32> to vector<8x32xf32>
    %68 = vector.extract_strided_slice %23 {offsets = [8, 64], sizes = [8, 32], strides = [1, 1]} : vector<16x96xf32> to vector<8x32xf32>
    %69 = tpu.concatenate %67, %67, %67, %67 in 0 : vector<8x32xf32>, vector<8x32xf32>, vector<8x32xf32>, vector<8x32xf32> -> vector<32x32xf32>
    %70 = arith.mulf %69, %9 : vector<32x32xf32>
    %71 = tpu.concatenate %68, %68, %68, %68 in 0 : vector<8x32xf32>, vector<8x32xf32>, vector<8x32xf32>, vector<8x32xf32> -> vector<32x32xf32>
    %72 = arith.mulf %71, %9 : vector<32x32xf32>
    %73 = arith.truncf %66 : vector<8x32xf32> to vector<8x32xbf16>
    %74 = arith.truncf %70 : vector<32x32xf32> to vector<32x32xbf16>
    %cst_34 = arith.constant dense<0.000000e+00> : vector<8x32xf32>
    %75 = tpu.matmul %73, %74, %cst_34 {dimension_numbers = #tpu.dot_dimension_numbers<[1], [1], [0], [0], [0, 0, 1, 0], [], []>} : vector<8x32xbf16>, vector<32x32xbf16>, vector<8x32xf32> -> vector<8x32xf32>
    %76 = arith.truncf %66 : vector<8x32xf32> to vector<8x32xbf16>
    %c1_35 = arith.constant 1 : index
    %c0_36 = arith.constant 0 : index
    %c0_37 = arith.constant 0 : index
    %77 = vector.load %arg2[%c1_35, %c0_36, %c0_37] : memref<2x32x256xbf16, #tpu.memory_space<vmem>>, vector<1x32x256xbf16>
    %78 = vector.shape_cast %77 : vector<1x32x256xbf16> to vector<32x256xbf16>
    %cst_38 = arith.constant dense<0.000000e+00> : vector<8x256xf32>
    %79 = tpu.matmul %76, %78, %cst_38 {dimension_numbers = #tpu.dot_dimension_numbers<[1], [0], [0], [1], [0, 0, 1, 1], [], []>} : vector<8x32xbf16>, vector<32x256xbf16>, vector<8x256xf32> -> vector<8x256xf32>
    %80 = arith.mulf %79, %11 : vector<8x256xf32>
    %81 = arith.truncf %80 : vector<8x256xf32> to vector<8x256xbf16>
    %cst_39 = arith.constant dense<0.000000e+00> : vector<8x32xf32>
    %82 = tpu.matmul %81, %13, %cst_39 {dimension_numbers = #tpu.dot_dimension_numbers<[1], [0], [0], [1], [0, 0, 1, 1], [], []>} : vector<8x256xbf16>, vector<256x32xbf16>, vector<8x32xf32> -> vector<8x32xf32>
    %83 = arith.addf %75, %82 : vector<8x32xf32>
    %cst_40 = arith.constant dense<0xFF800000> : vector<8xf32>
    %84 = vector.multi_reduction <maximumf>, %83, %cst_40 [1] : vector<8x32xf32> to vector<8xf32>
    %85 = vector.shape_cast %84 : vector<8xf32> to vector<8x1xf32>
    %86 = vector.broadcast %85 : vector<8x1xf32> to vector<8x32xf32>
    %87 = arith.subf %83, %86 : vector<8x32xf32>
    %88 = math.exp %87 : vector<8x32xf32>
    %89 = arith.truncf %88 : vector<8x32xf32> to vector<8x32xbf16>
    %cst_41 = arith.constant dense<0.000000e+00> : vector<8x32xf32>
    %90 = tpu.matmul %89, %10, %cst_41 {dimension_numbers = #tpu.dot_dimension_numbers<[1], [0], [0], [1], [0, 0, 1, 1], [], []>} : vector<8x32xbf16>, vector<32x32xbf16>, vector<8x32xf32> -> vector<8x32xf32>
    %91 = tpu.reciprocal %90 : vector<8x32xf32> -> vector<8x32xf32>
    %92 = arith.mulf %88, %91 : vector<8x32xf32>
    %93 = arith.truncf %92 : vector<8x32xf32> to vector<8x32xbf16>
    %94 = arith.truncf %72 : vector<32x32xf32> to vector<32x32xbf16>
    %cst_42 = arith.constant dense<0.000000e+00> : vector<8x32xf32>
    %95 = tpu.matmul %93, %94, %cst_42 {dimension_numbers = #tpu.dot_dimension_numbers<[1], [0], [0], [1], [0, 0, 1, 1], [], []>} : vector<8x32xbf16>, vector<32x32xbf16>, vector<8x32xf32> -> vector<8x32xf32>
    %96 = arith.truncf %92 : vector<8x32xf32> to vector<8x32xbf16>
    %cst_43 = arith.constant dense<0.000000e+00> : vector<8x256xf32>
    %97 = tpu.matmul %96, %12, %cst_43 {dimension_numbers = #tpu.dot_dimension_numbers<[1], [0], [0], [1], [0, 0, 1, 1], [], []>} : vector<8x32xbf16>, vector<32x256xbf16>, vector<8x256xf32> -> vector<8x256xf32>
    %98 = arith.mulf %97, %11 : vector<8x256xf32>
    %99 = arith.truncf %98 : vector<8x256xf32> to vector<8x256xbf16>
    %c1_44 = arith.constant 1 : index
    %c0_45 = arith.constant 0 : index
    %c0_46 = arith.constant 0 : index
    %100 = vector.load %arg3[%c1_44, %c0_45, %c0_46] : memref<2x256x32xbf16, #tpu.memory_space<vmem>>, vector<1x256x32xbf16>
    %101 = vector.shape_cast %100 : vector<1x256x32xbf16> to vector<256x32xbf16>
    %cst_47 = arith.constant dense<0.000000e+00> : vector<8x32xf32>
    %102 = tpu.matmul %99, %101, %cst_47 {dimension_numbers = #tpu.dot_dimension_numbers<[1], [0], [0], [1], [0, 0, 1, 1], [], []>} : vector<8x256xbf16>, vector<256x32xbf16>, vector<8x32xf32> -> vector<8x32xf32>
    %103 = arith.addf %95, %102 : vector<8x32xf32>
    %104 = tpu.concatenate %63, %103 in 0 : vector<8x32xf32>, vector<8x32xf32> -> vector<16x32xf32>
    %105 = arith.truncf %104 : vector<16x32xf32> to vector<16x32xbf16>
    %c0_48 = arith.constant 0 : index
    %c0_49 = arith.constant 0 : index
    %106 = vector.load %arg5[%c0_48, %c0_49] : memref<32x32xbf16, #tpu.memory_space<vmem>>, vector<32x32xbf16>
    %cst_50 = arith.constant dense<0.000000e+00> : vector<16x32xf32>
    %107 = tpu.matmul %105, %106, %cst_50 {dimension_numbers = #tpu.dot_dimension_numbers<[1], [0], [0], [1], [0, 0, 1, 1], [], []>} : vector<16x32xbf16>, vector<32x32xbf16>, vector<16x32xf32> -> vector<16x32xf32>
    %108 = vector.broadcast %2 : vector<1x32xf32> to vector<16x32xf32>
    %109 = arith.addf %107, %108 : vector<16x32xf32>
    %110 = arith.addf %18, %109 : vector<16x32xf32>
    %cst_51 = arith.constant dense<0.000000e+00> : vector<16xf32>
    %111 = vector.multi_reduction <add>, %110, %cst_51 [1] : vector<16x32xf32> to vector<16xf32>
    %112 = vector.shape_cast %111 : vector<16xf32> to vector<16x1xf32>
    %cst_52 = arith.constant 3.200000e+01 : f32
    %113 = vector.broadcast %cst_52 : f32 to vector<16x1xf32>
    %114 = arith.divf %112, %113 : vector<16x1xf32>
    %115 = vector.broadcast %114 : vector<16x1xf32> to vector<16x32xf32>
    %116 = arith.subf %110, %115 : vector<16x32xf32>
    %117 = arith.mulf %116, %116 : vector<16x32xf32>
    %cst_53 = arith.constant dense<0.000000e+00> : vector<16xf32>
    %118 = vector.multi_reduction <add>, %117, %cst_53 [1] : vector<16x32xf32> to vector<16xf32>
    %119 = vector.shape_cast %118 : vector<16xf32> to vector<16x1xf32>
    %cst_54 = arith.constant 3.200000e+01 : f32
    %120 = vector.broadcast %cst_54 : f32 to vector<16x1xf32>
    %121 = arith.divf %119, %120 : vector<16x1xf32>
    %122 = vector.broadcast %114 : vector<16x1xf32> to vector<16x32xf32>
    %123 = arith.subf %110, %122 : vector<16x32xf32>
    %cst_55 = arith.constant 9.99999974E-6 : f32
    %124 = vector.broadcast %cst_55 : f32 to vector<16x1xf32>
    %125 = arith.addf %121, %124 : vector<16x1xf32>
    %126 = math.rsqrt %125 : vector<16x1xf32>
    %127 = vector.broadcast %126 : vector<16x1xf32> to vector<16x32xf32>
    %128 = arith.mulf %123, %127 : vector<16x32xf32>
    %129 = vector.broadcast %3 : vector<1x32xf32> to vector<16x32xf32>
    %130 = arith.mulf %128, %129 : vector<16x32xf32>
    %131 = vector.broadcast %4 : vector<1x32xf32> to vector<16x32xf32>
    %132 = arith.addf %130, %131 : vector<16x32xf32>
    %133 = arith.truncf %132 : vector<16x32xf32> to vector<16x32xbf16>
    %c0_56 = arith.constant 0 : index
    %c0_57 = arith.constant 0 : index
    %134 = vector.load %arg6[%c0_56, %c0_57] : memref<32x64xbf16, #tpu.memory_space<vmem>>, vector<32x64xbf16>
    %cst_58 = arith.constant dense<0.000000e+00> : vector<16x64xf32>
    %135 = tpu.matmul %133, %134, %cst_58 {dimension_numbers = #tpu.dot_dimension_numbers<[1], [0], [0], [1], [0, 0, 1, 1], [], []>} : vector<16x32xbf16>, vector<32x64xbf16>, vector<16x64xf32> -> vector<16x64xf32>
    %136 = vector.broadcast %5 : vector<1x64xf32> to vector<16x64xf32>
    %137 = arith.addf %135, %136 : vector<16x64xf32>
    %cst_59 = arith.constant 0.000000e+00 : f32
    %138 = vector.broadcast %cst_59 : f32 to vector<16x64xf32>
    %139 = arith.maximumf %137, %138 : vector<16x64xf32>
    %140 = arith.truncf %139 : vector<16x64xf32> to vector<16x64xbf16>
    %c0_60 = arith.constant 0 : index
    %c0_61 = arith.constant 0 : index
    %141 = vector.load %arg7[%c0_60, %c0_61] : memref<64x32xbf16, #tpu.memory_space<vmem>>, vector<64x32xbf16>
    %cst_62 = arith.constant dense<0.000000e+00> : vector<16x32xf32>
    %142 = tpu.matmul %140, %141, %cst_62 {dimension_numbers = #tpu.dot_dimension_numbers<[1], [0], [0], [1], [0, 0, 1, 1], [], []>} : vector<16x64xbf16>, vector<64x32xbf16>, vector<16x32xf32> -> vector<16x32xf32>
    %143 = vector.broadcast %6 : vector<1x32xf32> to vector<16x32xf32>
    %144 = arith.addf %142, %143 : vector<16x32xf32>
    %145 = arith.addf %132, %144 : vector<16x32xf32>
    %cst_63 = arith.constant dense<0.000000e+00> : vector<16xf32>
    %146 = vector.multi_reduction <add>, %145, %cst_63 [1] : vector<16x32xf32> to vector<16xf32>
    %147 = vector.shape_cast %146 : vector<16xf32> to vector<16x1xf32>
    %cst_64 = arith.constant 3.200000e+01 : f32
    %148 = vector.broadcast %cst_64 : f32 to vector<16x1xf32>
    %149 = arith.divf %147, %148 : vector<16x1xf32>
    %150 = vector.broadcast %149 : vector<16x1xf32> to vector<16x32xf32>
    %151 = arith.subf %145, %150 : vector<16x32xf32>
    %152 = arith.mulf %151, %151 : vector<16x32xf32>
    %cst_65 = arith.constant dense<0.000000e+00> : vector<16xf32>
    %153 = vector.multi_reduction <add>, %152, %cst_65 [1] : vector<16x32xf32> to vector<16xf32>
    %154 = vector.shape_cast %153 : vector<16xf32> to vector<16x1xf32>
    %cst_66 = arith.constant 3.200000e+01 : f32
    %155 = vector.broadcast %cst_66 : f32 to vector<16x1xf32>
    %156 = arith.divf %154, %155 : vector<16x1xf32>
    %157 = vector.broadcast %149 : vector<16x1xf32> to vector<16x32xf32>
    %158 = arith.subf %145, %157 : vector<16x32xf32>
    %cst_67 = arith.constant 9.99999974E-6 : f32
    %159 = vector.broadcast %cst_67 : f32 to vector<16x1xf32>
    %160 = arith.addf %156, %159 : vector<16x1xf32>
    %161 = math.rsqrt %160 : vector<16x1xf32>
    %162 = vector.broadcast %161 : vector<16x1xf32> to vector<16x32xf32>
    %163 = arith.mulf %158, %162 : vector<16x32xf32>
    %164 = vector.broadcast %7 : vector<1x32xf32> to vector<16x32xf32>
    %165 = arith.mulf %163, %164 : vector<16x32xf32>
    %166 = vector.broadcast %8 : vector<1x32xf32> to vector<16x32xf32>
    %167 = arith.addf %165, %166 : vector<16x32xf32>
    %168 = vector.extract_strided_slice %167 {offsets = [0, 0], sizes = [8, 32], strides = [1, 1]} : vector<16x32xf32> to vector<8x32xf32>
    %c0_68 = arith.constant 0 : index
    %c0_69 = arith.constant 0 : index
    %c0_70 = arith.constant 0 : index
    %169 = vector.load %arg14[%c0_68, %c0_69, %c0_70] : memref<2x8x32xf32, #tpu.memory_space<vmem>>, vector<1x8x32xf32>
    %170 = vector.shape_cast %169 : vector<1x8x32xf32> to vector<8x32xf32>
    %171 = vector.shape_cast %168 : vector<8x32xf32> to vector<1x8x32xf32>
    tpu.vector_store %arg14[%c0_68, %c0_69, %c0_70], %171 {strides = array<i32>} : memref<2x8x32xf32, #tpu.memory_space<vmem>>, vector<1x8x32xf32>,
    %172 = vector.extract_strided_slice %167 {offsets = [8, 0], sizes = [8, 32], strides = [1, 1]} : vector<16x32xf32> to vector<8x32xf32>
    %c1_71 = arith.constant 1 : index
    %c0_72 = arith.constant 0 : index
    %c0_73 = arith.constant 0 : index
    %173 = vector.load %arg14[%c1_71, %c0_72, %c0_73] : memref<2x8x32xf32, #tpu.memory_space<vmem>>, vector<1x8x32xf32>
    %174 = vector.shape_cast %173 : vector<1x8x32xf32> to vector<8x32xf32>
    %175 = vector.shape_cast %172 : vector<8x32xf32> to vector<1x8x32xf32>
    tpu.vector_store %arg14[%c1_71, %c0_72, %c0_73], %175 {strides = array<i32>} : memref<2x8x32xf32, #tpu.memory_space<vmem>>, vector<1x8x32xf32>,
    return
  }
  func.func @transform_0(%arg0: i32) -> (i32, i32, i32) {
    %c0_i32 = arith.constant 0 : i32
    %c0_i32_0 = arith.constant 0 : i32
    %c0_i32_1 = arith.constant 0 : i32
    return %arg0, %c0_i32, %c0_i32_0 : i32, i32, i32
  }
  func.func @transform_1(%arg0: i32) -> (i32, i32, i32) {
    %c0_i32 = arith.constant 0 : i32
    %c0_i32_0 = arith.constant 0 : i32
    %c0_i32_1 = arith.constant 0 : i32
    return %arg0, %c0_i32, %c0_i32_0 : i32, i32, i32
  }
  func.func @transform_2(%arg0: i32) -> (i32, i32, i32) {
    %c0_i32 = arith.constant 0 : i32
    %c0_i32_0 = arith.constant 0 : i32
    %c0_i32_1 = arith.constant 0 : i32
    return %arg0, %c0_i32, %c0_i32_0 : i32, i32, i32
  }
  func.func @transform_3(%arg0: i32) -> (i32, i32) {
    %c0_i32 = arith.constant 0 : i32
    %c0_i32_0 = arith.constant 0 : i32
    %c0_i32_1 = arith.constant 0 : i32
    return %c0_i32, %c0_i32_0 : i32, i32
  }
  func.func @transform_4(%arg0: i32) -> (i32, i32) {
    %c0_i32 = arith.constant 0 : i32
    %c0_i32_0 = arith.constant 0 : i32
    %c0_i32_1 = arith.constant 0 : i32
    return %c0_i32, %c0_i32_0 : i32, i32
  }
  func.func @transform_5(%arg0: i32) -> (i32, i32) {
    %c0_i32 = arith.constant 0 : i32
    %c0_i32_0 = arith.constant 0 : i32
    %c0_i32_1 = arith.constant 0 : i32
    return %c0_i32, %c0_i32_0 : i32, i32
  }
  func.func @transform_6(%arg0: i32) -> (i32, i32) {
    %c0_i32 = arith.constant 0 : i32
    %c0_i32_0 = arith.constant 0 : i32
    %c0_i32_1 = arith.constant 0 : i32
    return %c0_i32, %c0_i32_0 : i32, i32
  }
  func.func @transform_7(%arg0: i32) -> (i32, i32) {
    %c0_i32 = arith.constant 0 : i32
    %c0_i32_0 = arith.constant 0 : i32
    %c0_i32_1 = arith.constant 0 : i32
    return %c0_i32, %c0_i32_0 : i32, i32
  }
  func.func @transform_8(%arg0: i32) -> (i32, i32) {
    %c0_i32 = arith.constant 0 : i32
    %c0_i32_0 = arith.constant 0 : i32
    %c0_i32_1 = arith.constant 0 : i32
    return %c0_i32, %c0_i32_0 : i32, i32
  }
  func.func @transform_9(%arg0: i32) -> (i32, i32) {
    %c0_i32 = arith.constant 0 : i32
    %c0_i32_0 = arith.constant 0 : i32
    %c0_i32_1 = arith.constant 0 : i32
    return %c0_i32, %c0_i32_0 : i32, i32
  }
  func.func @transform_10(%arg0: i32) -> (i32, i32) {
    %c0_i32 = arith.constant 0 : i32
    %c0_i32_0 = arith.constant 0 : i32
    %c0_i32_1 = arith.constant 0 : i32
    return %c0_i32, %c0_i32_0 : i32, i32
  }
  func.func @transform_11(%arg0: i32) -> (i32, i32) {
    %c0_i32 = arith.constant 0 : i32
    %c0_i32_0 = arith.constant 0 : i32
    %c0_i32_1 = arith.constant 0 : i32
    return %c0_i32, %c0_i32_0 : i32, i32
  }
  func.func @transform_12(%arg0: i32) -> (i32, i32) {
    %c0_i32 = arith.constant 0 : i32
    %c0_i32_0 = arith.constant 0 : i32
    %c0_i32_1 = arith.constant 0 : i32
    return %c0_i32, %c0_i32_0 : i32, i32
  }
  func.func @transform_13(%arg0: i32) -> (i32, i32, i32) {
    %c0_i32 = arith.constant 0 : i32
    %c0_i32_0 = arith.constant 0 : i32
    %c0_i32_1 = arith.constant 0 : i32
    return %arg0, %c0_i32, %c0_i32_0 : i32, i32, i32
  }
}

</mosaic_0001>

<llo_original>
// kernel: tpu_custom_call.1
$region0: #{tpu_custom_call.1}
  #allocation0 [shape = 'u32[]', space=smem, size = 0x4, offset = 0x4, fixed_abs, tag = 'smem constant byte address 0x4 - core index']
  #allocation1 [shape = 'u32[144,128]{1,0:T(1,128)}', space=vmem, size = 0x12000, scoped, tag = 'internal scratch']
  %s0 = inlined_call_operand.vmem [shape: f32[2,8,32], index: 0, kind: input, shape index: {}]
  %s1 = inlined_call_operand.vmem [shape: bf16[2,32,256], index: 1, kind: input, shape index: {}]
  %s2 = inlined_call_operand.vmem [shape: bf16[2,256,32], index: 2, kind: input, shape index: {}]
  %s3 = inlined_call_operand.vmem [shape: bf16[32,96], index: 3, kind: input, shape index: {}]
  %s4 = inlined_call_operand.vmem [shape: bf16[32,32], index: 4, kind: input, shape index: {}]
  %s5 = inlined_call_operand.vmem [shape: bf16[32,64], index: 5, kind: input, shape index: {}]
  %s6 = inlined_call_operand.vmem [shape: bf16[64,32], index: 6, kind: input, shape index: {}]
  %s7 = inlined_call_operand.vmem [shape: f32[8,96], index: 7, kind: input, shape index: {}]
  %s8 = inlined_call_operand.vmem [shape: f32[32,32], index: 8, kind: input, shape index: {}]
  %s9 = inlined_call_operand.vmem [shape: bf16[32,32], index: 9, kind: input, shape index: {}]
  %s10 = inlined_call_operand.vmem [shape: f32[8,256], index: 10, kind: input, shape index: {}]
  %s11 = inlined_call_operand.vmem [shape: bf16[32,256], index: 11, kind: input, shape index: {}]
  %s12 = inlined_call_operand.vmem [shape: bf16[256,32], index: 12, kind: input, shape index: {}]
  %s13 = inlined_call_operand.hbm [shape: f32[2,8,32], index: 13, kind: output, shape index: {}]
  %s14 = sld [smem:[#allocation0]]
  $region62: #{tpu_custom_call.1} parent=0
    _
  %s16 = ssub.s32 1, %s14
  %s17 = scalar_select 0, %s16, %s14
  $region1: #{tpu_custom_call.1} parent=0
    #allocation2 [shape = 'u8[8192]{0}', space=vmem, size = 0x2000, scoped, tag = 'output window, operand 0, single buffered']
    #allocation3 [shape = 's32[1]{0}', space=sflag, size = 0x4, scoped, tag = 'scoped memory for tpu_custom_call.1']
    %18 = vsyncpa [#allocation3], 0
    // Predicated region
    $region2: #{tpu_custom_call.1} parent=1 // pred_check
      _
    $region3: #{tpu_custom_call.1} parent=1 // pred_check_branch
      %20 = sbr.rel (0) target = $region5
    $region4: #{tpu_custom_call.1} parent=1 // pred_region
      _
    $region5: #{tpu_custom_call.1} parent=1 // pred_fallthru
      _
    // Predicated region
    $region6: #{tpu_custom_call.1} parent=1 // pred_check
      _
    $region7: #{tpu_custom_call.1} parent=1 // pred_check_branch
      %22 = sbr.rel (0) target = $region9
    $region8: #{tpu_custom_call.1} parent=1 // pred_region
      _
    $region9: #{tpu_custom_call.1} parent=1 // pred_fallthru
      _
    // Predicated region
    $region10: #{tpu_custom_call.1} parent=1 // pred_check
      _
    $region11: #{tpu_custom_call.1} parent=1 // pred_check_branch
      %24 = sbr.rel (0) target = $region13
    $region12: #{tpu_custom_call.1} parent=1 // pred_region
      _
    $region13: #{tpu_custom_call.1} parent=1 // pred_fallthru
      _
    // Predicated region
    $region14: #{tpu_custom_call.1} parent=1 // pred_check
      _
    $region15: #{tpu_custom_call.1} parent=1 // pred_check_branch
      %26 = sbr.rel (0) target = $region17
    $region16: #{tpu_custom_call.1} parent=1 // pred_region
      _
    $region17: #{tpu_custom_call.1} parent=1 // pred_fallthru
      _
    // Predicated region
    $region18: #{tpu_custom_call.1} parent=1 // pred_check
      _
    $region19: #{tpu_custom_call.1} parent=1 // pred_check_branch
      %28 = sbr.rel (0) target = $region21
    $region20: #{tpu_custom_call.1} parent=1 // pred_region
      _
    $region21: #{tpu_custom_call.1} parent=1 // pred_fallthru
      _
    // Predicated region
    $region22: #{tpu_custom_call.1} parent=1 // pred_check
      _
    $region23: #{tpu_custom_call.1} parent=1 // pred_check_branch
      %30 = sbr.rel (0) target = $region25
    $region24: #{tpu_custom_call.1} parent=1 // pred_region
      _
    $region25: #{tpu_custom_call.1} parent=1 // pred_fallthru
      _
    // Predicated region
    $region26: #{tpu_custom_call.1} parent=1 // pred_check
      _
    $region27: #{tpu_custom_call.1} parent=1 // pred_check_branch
      %32 = sbr.rel (0) target = $region29
    $region28: #{tpu_custom_call.1} parent=1 // pred_region
      _
    $region29: #{tpu_custom_call.1} parent=1 // pred_fallthru
      _
    // Predicated region
    $region30: #{tpu_custom_call.1} parent=1 // pred_check
      _
    $region31: #{tpu_custom_call.1} parent=1 // pred_check_branch
      %34 = sbr.rel (0) target = $region33
    $region32: #{tpu_custom_call.1} parent=1 // pred_region
      _
    $region33: #{tpu_custom_call.1} parent=1 // pred_fallthru
      _
    // Predicated region
    $region34: #{tpu_custom_call.1} parent=1 // pred_check
      _
    $region35: #{tpu_custom_call.1} parent=1 // pred_check_branch
      %36 = sbr.rel (0) target = $region37
    $region36: #{tpu_custom_call.1} parent=1 // pred_region
      _
    $region37: #{tpu_custom_call.1} parent=1 // pred_fallthru
      _
    // Predicated region
    $region38: #{tpu_custom_call.1} parent=1 // pred_check
      _
    $region39: #{tpu_custom_call.1} parent=1 // pred_check_branch
      %38 = sbr.rel (0) target = $region41
    $region40: #{tpu_custom_call.1} parent=1 // pred_region
      _
    $region41: #{tpu_custom_call.1} parent=1 // pred_fallthru
      _
    // Predicated region
    $region42: #{tpu_custom_call.1} parent=1 // pred_check
      _
    $region43: #{tpu_custom_call.1} parent=1 // pred_check_branch
      %40 = sbr.rel (0) target = $region45
    $region44: #{tpu_custom_call.1} parent=1 // pred_region
      _
    $region45: #{tpu_custom_call.1} parent=1 // pred_fallthru
      _
    // Predicated region
    $region46: #{tpu_custom_call.1} parent=1 // pred_check
      _
    $region47: #{tpu_custom_call.1} parent=1 // pred_check_branch
      %42 = sbr.rel (0) target = $region49
    $region48: #{tpu_custom_call.1} parent=1 // pred_region
      _
    $region49: #{tpu_custom_call.1} parent=1 // pred_fallthru
      _
    // Predicated region
    $region50: #{tpu_custom_call.1} parent=1 // pred_check
      _
    $region51: #{tpu_custom_call.1} parent=1 // pred_check_branch
      %44 = sbr.rel (0) target = $region53
    $region52: #{tpu_custom_call.1} parent=1 // pred_region
      _
    $region53: #{tpu_custom_call.1} parent=1 // pred_fallthru
      _
    %v46 = vld [vmem:[%s7] sm:$0xff]
    %v47 = vld [vmem:[%s8] sm:$0xff]
    %v48 = vld [vmem:[%s8 + $0x8] sm:$0xff]
    %v49 = vld [vmem:[%s8 + $0x10] sm:$0xff]
    %v50 = vld [vmem:[%s8 + $0x18] sm:$0xff]
    %v51 = vld [vmem:[%s9] sm:$0xf]
    %v52 = vld [vmem:[%s9 + $0x4] sm:$0xf]
    %v53 = vld [vmem:[%s9 + $0x8] sm:$0xf]
    %v54 = vld [vmem:[%s9 + $0xc] sm:$0xf]
    %v55 = vld [vmem:[%s10] sm:$0xff]
    %v56 = vld [vmem:[%s10 + $0x8] sm:$0xff]
    %v57 = vld [vmem:[%s11] sm:$0xff]
    %v58 = vld [vmem:[%s11 + $0x8] sm:$0xff]
    %v59 = vld [vmem:[%s11 + $0x10] sm:$0xff]
    %v60 = vld [vmem:[%s11 + $0x18] sm:$0xff]
    %v61 = vld [vmem:[%s12] sm:$0xf]
    %v62 = vld [vmem:[%s12 + $0x4] sm:$0xf]
    %v63 = vld [vmem:[%s12 + $0x8] sm:$0xf]
    %v64 = vld [vmem:[%s12 + $0xc] sm:$0xf]
    %v65 = vld [vmem:[%s12 + $0x10] sm:$0xf]
    %v66 = vld [vmem:[%s12 + $0x14] sm:$0xf]
    %v67 = vld [vmem:[%s12 + $0x18] sm:$0xf]
    %v68 = vld [vmem:[%s12 + $0x1c] sm:$0xf]
    %v69 = vld [vmem:[%s12 + $0x20] sm:$0xf]
    %v70 = vld [vmem:[%s12 + $0x24] sm:$0xf]
    %v71 = vld [vmem:[%s12 + $0x28] sm:$0xf]
    %v72 = vld [vmem:[%s12 + $0x2c] sm:$0xf]
    %v73 = vld [vmem:[%s12 + $0x30] sm:$0xf]
    %v74 = vld [vmem:[%s12 + $0x34] sm:$0xf]
    %v75 = vld [vmem:[%s12 + $0x38] sm:$0xf]
    %v76 = vld [vmem:[%s12 + $0x3c] sm:$0xf]
    %v77 = vld [vmem:[%s12 + $0x40] sm:$0xf]
    %v78 = vld [vmem:[%s12 + $0x44] sm:$0xf]
    %v79 = vld [vmem:[%s12 + $0x48] sm:$0xf]
    %v80 = vld [vmem:[%s12 + $0x4c] sm:$0xf]
    %v81 = vld [vmem:[%s12 + $0x50] sm:$0xf]
    %v82 = vld [vmem:[%s12 + $0x54] sm:$0xf]
    %v83 = vld [vmem:[%s12 + $0x58] sm:$0xf]
    %v84 = vld [vmem:[%s12 + $0x5c] sm:$0xf]
    %v85 = vld [vmem:[%s12 + $0x60] sm:$0xf]
    %v86 = vld [vmem:[%s12 + $0x64] sm:$0xf]
    %v87 = vld [vmem:[%s12 + $0x68] sm:$0xf]
    %v88 = vld [vmem:[%s12 + $0x6c] sm:$0xf]
    %v89 = vld [vmem:[%s12 + $0x70] sm:$0xf]
    %v90 = vld [vmem:[%s12 + $0x74] sm:$0xf]
    %v91 = vld [vmem:[%s12 + $0x78] sm:$0xf]
    %v92 = vld [vmem:[%s12 + $0x7c] sm:$0xf]
    %v93 = vld [vmem:[%s0] sm:$0xff]
    %s94 = scalar_lea.vmem %s0, 8
    %v95 = vld [vmem:[%s94] sm:$0xff]
    %v96 = vpack.c.bf16 %v95, %v93
    %v97 = vld [vmem:[%s3] sm:$0xf]
    %v98 = vld [vmem:[%s3 + $0x4] sm:$0xf]
    %v99 = vld [vmem:[%s3 + $0x8] sm:$0xf]
    %v100 = vld [vmem:[%s3 + $0xc] sm:$0xf]
    %v101 = vlaneseq
    %v102 = vshrl.u32 %v101, 7
    %v103 = vsub.s32 0, %v102
    %v104 = vrot.slane %v46, %v103
    %v109 = vunpack.c.l.b16 %v97
    %v110 = vunpack.c.l.b16 %v98
    %v111 = vunpack.c.l.b16 %v99
    %v112 = vunpack.c.l.b16 %v100
    %v113 = vpack.c.b16 %v110, %v109
    %v114 = vpack.c.b16 %v112, %v111
    %vm117 = vcmask 261120
    %v119 = vsel %vm117, %v96, 0
    %121 = vmatprep.subr.bf16.mxu0 0
    %122 = vmatpush1.bf16.msra.mxu0 %v113
    %123 = vmatprep.subr.bf16.mxu0 0
    %124 = vmatpush1.bf16.msra.mxu0 %v114
    %125 = vmatprep.subr.bf16.mxu0 0
    %126 = vmatpush1.bf16.msra.mxu0 0
    %127 = vmatprep.subr.bf16.mxu0 0
    %128 = vmatpush1.bf16.msra.mxu0 0
    %129 = vmatprep.subr.bf16.mxu0 0
    %130 = vmatpush1.bf16.msra.mxu0 0
    %131 = vmatprep.subr.bf16.mxu0 0
    %132 = vmatpush1.bf16.msra.mxu0 0
    %133 = vmatprep.subr.bf16.mxu0 0
    %134 = vmatpush1.bf16.msra.mxu0 0
    %135 = vmatprep.subr.bf16.mxu0 0
    %136 = vmatpush1.bf16.msra.mxu0 0
    %137 = vmatprep.subr.bf16.mxu0 0
    %138 = vmatpush1.bf16.msra.mxu0 0
    %139 = vmatprep.subr.bf16.mxu0 0
    %140 = vmatpush1.bf16.msra.mxu0 0
    %141 = vmatprep.subr.bf16.mxu0 0
    %142 = vmatpush1.bf16.msra.mxu0 0
    %143 = vmatprep.subr.bf16.mxu0 0
    %144 = vmatpush1.bf16.msra.mxu0 0
    %145 = vmatprep.subr.bf16.mxu0 0
    %146 = vmatpush1.bf16.msra.mxu0 0
    %147 = vmatprep.subr.bf16.mxu0 0
    %148 = vmatpush1.bf16.msra.mxu0 0
    %149 = vmatprep.subr.bf16.mxu0 0
    %150 = vmatpush1.bf16.msra.mxu0 0
    %151 = vmatprep.subr.bf16.mxu0 0
    %152 = vmatpush1.bf16.msra.mxu0 0
    %153 = vmatprep.mubr.bf16.mxu0 0
    %154 = vmatmul.mubr.bf16.gmra.mrb[0].mxu0 %v119
    %v155 = vpop.f32.mrb[0].mxu0
    %v156 = vadd.f32 %v104, %v155
    %v157 = vpop.f32.mrb[0].mxu0
    %v158 = vpop.f32.mrb[0].mxu0
    %v159 = vadd.f32 %v104, %v158
    %v160 = vpop.f32.mrb[0].mxu0
    %161 = vdwg.mxu0
    %v162 = vmul.f32 %v156, 0.35355338
    %167 = vrot.lane.b32.xlu0 %v47, 32
    %v168 = vpop.permute.xlu0 %167
    %169 = vrot.lane.b32.xlu0 %v48, 32
    %v170 = vpop.permute.xlu0 %169
    %171 = vrot.lane.b32.xlu0 %v49, 32
    %v172 = vpop.permute.xlu0 %171
    %173 = vrot.lane.b32.xlu0 %v50, 32
    %v174 = vpop.permute.xlu0 %173
    %v179 = vmul.f32 %v156, %v168
    %v180 = vmul.f32 %v156, %v170
    %v181 = vmul.f32 %v156, %v172
    %v182 = vmul.f32 %v156, %v174
    %183 = vrot.lane.b32.xlu0 %v47, 64
    %v184 = vpop.permute.xlu0 %183
    %185 = vrot.lane.b32.xlu0 %v48, 64
    %v186 = vpop.permute.xlu0 %185
    %187 = vrot.lane.b32.xlu0 %v49, 64
    %v188 = vpop.permute.xlu0 %187
    %189 = vrot.lane.b32.xlu0 %v50, 64
    %v190 = vpop.permute.xlu0 %189
    %v195 = vmul.f32 %v156, %v184
    %v196 = vmul.f32 %v156, %v186
    %v197 = vmul.f32 %v156, %v188
    %v198 = vmul.f32 %v156, %v190
    %v199 = vpack.c.bf16 %v162, %v162
    %v200 = vpack.c.bf16 %v180, %v179
    %v201 = vpack.c.bf16 %v182, %v181
    %v202 = vld [vmem:[%s1] sm:$0xff]
    %v203 = vld [vmem:[%s1 + $0x8] sm:$0xff]
    %v204 = vld [vmem:[%s1 + $0x10] sm:$0xff]
    %v205 = vld [vmem:[%s1 + $0x18] sm:$0xff]
    %v210 = vunpack.c.l.b16 %v202
    %v211 = vunpack.c.h.b16 %v202
    %v212 = vunpack.c.l.b16 %v203
    %v213 = vunpack.c.h.b16 %v203
    %v214 = vunpack.c.l.b16 %v204
    %v215 = vunpack.c.h.b16 %v204
    %v216 = vunpack.c.l.b16 %v205
    %v217 = vunpack.c.h.b16 %v205
    %v218 = vpack.c.b16 %v212, %v210
    %v219 = vpack.c.b16 %v213, %v211
    %v220 = vpack.c.b16 %v216, %v214
    %v221 = vpack.c.b16 %v217, %v215
    %v227 = vsel %vm117, %v199, 0
    %229 = vmatprep.subr.bf16.mxu0 %v219
    %230 = vmatpush1.bf16.msra.mxu0 %v218
    %231 = vmatprep.subr.bf16.mxu0 %v221
    %232 = vmatpush1.bf16.msra.mxu0 %v220
    %233 = vmatprep.subr.bf16.mxu0 0
    %234 = vmatpush1.bf16.msra.mxu0 0
    %235 = vmatprep.subr.bf16.mxu0 0
    %236 = vmatpush1.bf16.msra.mxu0 0
    %237 = vmatprep.subr.bf16.mxu0 0
    %238 = vmatpush1.bf16.msra.mxu0 0
    %239 = vmatprep.subr.bf16.mxu0 0
    %240 = vmatpush1.bf16.msra.mxu0 0
    %241 = vmatprep.subr.bf16.mxu0 0
    %242 = vmatpush1.bf16.msra.mxu0 0
    %243 = vmatprep.subr.bf16.mxu0 0
    %244 = vmatpush1.bf16.msra.mxu0 0
    %245 = vmatprep.subr.bf16.mxu0 0
    %246 = vmatpush1.bf16.msra.mxu0 0
    %247 = vmatprep.subr.bf16.mxu0 0
    %248 = vmatpush1.bf16.msra.mxu0 0
    %249 = vmatprep.subr.bf16.mxu0 0
    %250 = vmatpush1.bf16.msra.mxu0 0
    %251 = vmatprep.subr.bf16.mxu0 0
    %252 = vmatpush1.bf16.msra.mxu0 0
    %253 = vmatprep.subr.bf16.mxu0 0
    %254 = vmatpush1.bf16.msra.mxu0 0
    %255 = vmatprep.subr.bf16.mxu0 0
    %256 = vmatpush1.bf16.msra.mxu0 0
    %257 = vmatprep.subr.bf16.mxu0 0
    %258 = vmatpush1.bf16.msra.mxu0 0
    %259 = vmatprep.subr.bf16.mxu0 0
    %260 = vmatpush1.bf16.msra.mxu0 0
    %261 = vmatprep.mubr.bf16.mxu0 0
    %262 = vmatmul.mubr.bf16.gmra.mrb[0].mxu0 %v227
    %v263 = vpop.f32.mrb[0].mxu0
    %v264 = vadd.f32 0.0, %v263
    %v265 = vpop.f32.mrb[0].mxu0
    %v266 = vadd.f32 0.0, %v265
    %v267 = vpop.f32.mrb[0].mxu0
    %v268 = vpop.f32.mrb[0].mxu0
    %269 = vdwg.mxu0
    %v270 = vmul.f32 %v264, %v55
    %v271 = vmul.f32 %v266, %v56
    %v272 = vpack.c.bf16 %v270, %v270
    %v273 = vpack.c.bf16 %v271, %v271
    %v306 = vunpack.c.l.b16 %v61
    %v307 = vunpack.c.l.b16 %v62
    %v308 = vunpack.c.l.b16 %v63
    %v309 = vunpack.c.l.b16 %v64
    %v310 = vunpack.c.l.b16 %v65
    %v311 = vunpack.c.l.b16 %v66
    %v312 = vunpack.c.l.b16 %v67
    %v313 = vunpack.c.l.b16 %v68
    %v314 = vunpack.c.l.b16 %v69
    %v315 = vunpack.c.l.b16 %v70
    %v316 = vunpack.c.l.b16 %v71
    %v317 = vunpack.c.l.b16 %v72
    %v318 = vunpack.c.l.b16 %v73
    %v319 = vunpack.c.l.b16 %v74
    %v320 = vunpack.c.l.b16 %v75
    %v321 = vunpack.c.l.b16 %v76
    %v322 = vunpack.c.l.b16 %v77
    %v323 = vunpack.c.l.b16 %v78
    %v324 = vunpack.c.l.b16 %v79
    %v325 = vunpack.c.l.b16 %v80
    %v326 = vunpack.c.l.b16 %v81
    %v327 = vunpack.c.l.b16 %v82
    %v328 = vunpack.c.l.b16 %v83
    %v329 = vunpack.c.l.b16 %v84
    %v330 = vunpack.c.l.b16 %v85
    %v331 = vunpack.c.l.b16 %v86
    %v332 = vunpack.c.l.b16 %v87
    %v333 = vunpack.c.l.b16 %v88
    %v334 = vunpack.c.l.b16 %v89
    %v335 = vunpack.c.l.b16 %v90
    %v336 = vunpack.c.l.b16 %v91
    %v337 = vunpack.c.l.b16 %v92
    %v338 = vpack.c.b16 %v307, %v306
    %v339 = vpack.c.b16 %v309, %v308
    %v340 = vpack.c.b16 %v311, %v310
    %v341 = vpack.c.b16 %v313, %v312
    %v342 = vpack.c.b16 %v315, %v314
    %v343 = vpack.c.b16 %v317, %v316
    %v344 = vpack.c.b16 %v319, %v318
    %v345 = vpack.c.b16 %v321, %v320
    %v346 = vpack.c.b16 %v323, %v322
    %v347 = vpack.c.b16 %v325, %v324
    %v348 = vpack.c.b16 %v327, %v326
    %v349 = vpack.c.b16 %v329, %v328
    %v350 = vpack.c.b16 %v331, %v330
    %v351 = vpack.c.b16 %v333, %v332
    %v352 = vpack.c.b16 %v335, %v334
    %v353 = vpack.c.b16 %v337, %v336
    %370 = vmatprep.subr.bf16.mxu0 0
    %371 = vmatpush1.bf16.msra.mxu0 %v338
    %372 = vmatprep.subr.bf16.mxu0 0
    %373 = vmatpush1.bf16.msra.mxu0 %v339
    %374 = vmatprep.subr.bf16.mxu0 0
    %375 = vmatpush1.bf16.msra.mxu0 %v340
    %376 = vmatprep.subr.bf16.mxu0 0
    %377 = vmatpush1.bf16.msra.mxu0 %v341
    %378 = vmatprep.subr.bf16.mxu0 0
    %379 = vmatpush1.bf16.msra.mxu0 %v342
    %380 = vmatprep.subr.bf16.mxu0 0
    %381 = vmatpush1.bf16.msra.mxu0 %v343
    %382 = vmatprep.subr.bf16.mxu0 0
    %383 = vmatpush1.bf16.msra.mxu0 %v344
    %384 = vmatprep.subr.bf16.mxu0 0
    %385 = vmatpush1.bf16.msra.mxu0 %v345
    %386 = vmatprep.subr.bf16.mxu0 0
    %387 = vmatpush1.bf16.msra.mxu0 %v346
    %388 = vmatprep.subr.bf16.mxu0 0
    %389 = vmatpush1.bf16.msra.mxu0 %v347
    %390 = vmatprep.subr.bf16.mxu0 0
    %391 = vmatpush1.bf16.msra.mxu0 %v348
    %392 = vmatprep.subr.bf16.mxu0 0
    %393 = vmatpush1.bf16.msra.mxu0 %v349
    %394 = vmatprep.subr.bf16.mxu0 0
    %395 = vmatpush1.bf16.msra.mxu0 %v350
    %396 = vmatprep.subr.bf16.mxu0 0
    %397 = vmatpush1.bf16.msra.mxu0 %v351
    %398 = vmatprep.subr.bf16.mxu0 0
    %399 = vmatpush1.bf16.msra.mxu0 %v352
    %400 = vmatprep.subr.bf16.mxu0 0
    %401 = vmatpush1.bf16.msra.mxu0 %v353
    %402 = vmatprep.mubr.bf16.mxu0 %v273
    %403 = vmatmul.mubr.bf16.gmra.mrb[0].mxu0 %v272
    %v404 = vpop.f32.mrb[0].mxu0
    %v405 = vadd.f32 0.0, %v404
    %v406 = vpop.f32.mrb[0].mxu0
    %v407 = vpop.f32.mrb[0].mxu0
    %v408 = vpop.f32.mrb[0].mxu0
    %409 = vdwg.mxu0
    %412 = vrot.lane.b32.xlu0 %v200, 96
    %v413 = vpop.permute.xlu0 %412
    %414 = vrot.lane.b32.xlu0 %v201, 96
    %v415 = vpop.permute.xlu0 %414
    %v417 = vsel %vm117, %v413, 0
    %v420 = vsel %vm117, %v415, 0
    %422 = vmatprep.subr.bf16.mxu0 0
    %423 = vmatpush1.bf16.xpose.msra.mxu0 %v417
    %424 = vmatprep.subr.bf16.mxu0 0
    %425 = vmatpush1.bf16.xpose.msra.mxu0 %v420
    %426 = vmatprep.subr.bf16.mxu0 0
    %427 = vmatpush1.bf16.xpose.msra.mxu0 0
    %428 = vmatprep.subr.bf16.mxu0 0
    %429 = vmatpush1.bf16.xpose.msra.mxu0 0
    %430 = vmatprep.subr.bf16.mxu0 0
    %431 = vmatpush1.bf16.xpose.msra.mxu0 0
    %432 = vmatprep.subr.bf16.mxu0 0
    %433 = vmatpush1.bf16.xpose.msra.mxu0 0
    %434 = vmatprep.subr.bf16.mxu0 0
    %435 = vmatpush1.bf16.xpose.msra.mxu0 0
    %436 = vmatprep.subr.bf16.mxu0 0
    %437 = vmatpush1.bf16.xpose.msra.mxu0 0
    %438 = vmatprep.subr.bf16.mxu0 0
    %439 = vmatpush1.bf16.xpose.msra.mxu0 0
    %440 = vmatprep.subr.bf16.mxu0 0
    %441 = vmatpush1.bf16.xpose.msra.mxu0 0
    %442 = vmatprep.subr.bf16.mxu0 0
    %443 = vmatpush1.bf16.xpose.msra.mxu0 0
    %444 = vmatprep.subr.bf16.mxu0 0
    %445 = vmatpush1.bf16.xpose.msra.mxu0 0
    %446 = vmatprep.subr.bf16.mxu0 0
    %447 = vmatpush1.bf16.xpose.msra.mxu0 0
    %448 = vmatprep.subr.bf16.mxu0 0
    %449 = vmatpush1.bf16.xpose.msra.mxu0 0
    %450 = vmatprep.subr.bf16.mxu0 0
    %451 = vmatpush1.bf16.xpose.msra.mxu0 0
    %452 = vmatprep.subr.bf16.mxu0 0
    %453 = vmatpush1.bf16.xpose.msra.mxu0 0
    %454 = vmatprep.mubr.bf16.mxu0 0
    %455 = vmatmul.mubr.bf16.gmra.mrb[0].mxu0 %v227
    %v456 = vpop.f32.mrb[0].mxu0
    %v457 = vadd.f32 %v405, %v456
    %v458 = vpop.f32.mrb[0].mxu0
    %v459 = vpop.f32.mrb[0].mxu0
    %v460 = vpop.f32.mrb[0].mxu0
    %461 = vdwg.mxu0
    %v462 = vsel %vm117, %v457, -inf
    %463 = vmax.xlane.f32.xlu0 %v462
    %v464 = vpop.xlane.xlu0 %463
    %v465 = vsub.f32 %v457, %v464
    %v466 = vmul.f32 %v465, 1.442695
    %v467 = vpow.pop %v466
    %v468 = vpack.c.bf16 %v467, %v467
    %v473 = vunpack.c.l.b16 %v51
    %v474 = vunpack.c.l.b16 %v52
    %v475 = vunpack.c.l.b16 %v53
    %v476 = vunpack.c.l.b16 %v54
    %v477 = vpack.c.b16 %v474, %v473
    %v478 = vpack.c.b16 %v476, %v475
    %v482 = vsel %vm117, %v468, 0
    %484 = vmatprep.subr.bf16.mxu0 0
    %485 = vmatpush1.bf16.msra.mxu0 %v477
    %486 = vmatprep.subr.bf16.mxu0 0
    %487 = vmatpush1.bf16.msra.mxu0 %v478
    %488 = vmatprep.subr.bf16.mxu0 0
    %489 = vmatpush1.bf16.msra.mxu0 0
    %490 = vmatprep.subr.bf16.mxu0 0
    %491 = vmatpush1.bf16.msra.mxu0 0
    %492 = vmatprep.subr.bf16.mxu0 0
    %493 = vmatpush1.bf16.msra.mxu0 0
    %494 = vmatprep.subr.bf16.mxu0 0
    %495 = vmatpush1.bf16.msra.mxu0 0
    %496 = vmatprep.subr.bf16.mxu0 0
    %497 = vmatpush1.bf16.msra.mxu0 0
    %498 = vmatprep.subr.bf16.mxu0 0
    %499 = vmatpush1.bf16.msra.mxu0 0
    %500 = vmatprep.subr.bf16.mxu0 0
    %501 = vmatpush1.bf16.msra.mxu0 0
    %502 = vmatprep.subr.bf16.mxu0 0
    %503 = vmatpush1.bf16.msra.mxu0 0
    %504 = vmatprep.subr.bf16.mxu0 0
    %505 = vmatpush1.bf16.msra.mxu0 0
    %506 = vmatprep.subr.bf16.mxu0 0
    %507 = vmatpush1.bf16.msra.mxu0 0
    %508 = vmatprep.subr.bf16.mxu0 0
    %509 = vmatpush1.bf16.msra.mxu0 0
    %510 = vmatprep.subr.bf16.mxu0 0
    %511 = vmatpush1.bf16.msra.mxu0 0
    %512 = vmatprep.subr.bf16.mxu0 0
    %513 = vmatpush1.bf16.msra.mxu0 0
    %514 = vmatprep.subr.bf16.mxu0 0
    %515 = vmatpush1.bf16.msra.mxu0 0
    %516 = vmatprep.mubr.bf16.mxu0 0
    %517 = vmatmul.mubr.bf16.gmra.mrb[0].mxu0 %v482
    %v518 = vpop.f32.mrb[0].mxu0
    %v519 = vadd.f32 0.0, %v518
    %v520 = vpop.f32.mrb[0].mxu0
    %v521 = vpop.f32.mrb[0].mxu0
    %v522 = vpop.f32.mrb[0].mxu0
    %523 = vdwg.mxu0
    %v524 = vrcp.pop %v519
    %v525 = vmul.f32 %v467, %v524
    %v526 = vpack.c.bf16 %v525, %v525
    %v527 = vpack.c.bf16 %v196, %v195
    %v528 = vpack.c.bf16 %v198, %v197
    %v533 = vunpack.c.l.b16 %v57
    %v534 = vunpack.c.h.b16 %v57
    %v535 = vunpack.c.l.b16 %v58
    %v536 = vunpack.c.h.b16 %v58
    %v537 = vunpack.c.l.b16 %v59
    %v538 = vunpack.c.h.b16 %v59
    %v539 = vunpack.c.l.b16 %v60
    %v540 = vunpack.c.h.b16 %v60
    %v541 = vpack.c.b16 %v535, %v533
    %v542 = vpack.c.b16 %v536, %v534
    %v543 = vpack.c.b16 %v539, %v537
    %v544 = vpack.c.b16 %v540, %v538
    %v550 = vsel %vm117, %v526, 0
    %552 = vmatprep.subr.bf16.mxu0 %v542
    %553 = vmatpush1.bf16.msra.mxu0 %v541
    %554 = vmatprep.subr.bf16.mxu0 %v544
    %555 = vmatpush1.bf16.msra.mxu0 %v543
    %556 = vmatprep.subr.bf16.mxu0 0
    %557 = vmatpush1.bf16.msra.mxu0 0
    %558 = vmatprep.subr.bf16.mxu0 0
    %559 = vmatpush1.bf16.msra.mxu0 0
    %560 = vmatprep.subr.bf16.mxu0 0
    %561 = vmatpush1.bf16.msra.mxu0 0
    %562 = vmatprep.subr.bf16.mxu0 0
    %563 = vmatpush1.bf16.msra.mxu0 0
    %564 = vmatprep.subr.bf16.mxu0 0
    %565 = vmatpush1.bf16.msra.mxu0 0
    %566 = vmatprep.subr.bf16.mxu0 0
    %567 = vmatpush1.bf16.msra.mxu0 0
    %568 = vmatprep.subr.bf16.mxu0 0
    %569 = vmatpush1.bf16.msra.mxu0 0
    %570 = vmatprep.subr.bf16.mxu0 0
    %571 = vmatpush1.bf16.msra.mxu0 0
    %572 = vmatprep.subr.bf16.mxu0 0
    %573 = vmatpush1.bf16.msra.mxu0 0
    %574 = vmatprep.subr.bf16.mxu0 0
    %575 = vmatpush1.bf16.msra.mxu0 0
    %576 = vmatprep.subr.bf16.mxu0 0
    %577 = vmatpush1.bf16.msra.mxu0 0
    %578 = vmatprep.subr.bf16.mxu0 0
    %579 = vmatpush1.bf16.msra.mxu0 0
    %580 = vmatprep.subr.bf16.mxu0 0
    %581 = vmatpush1.bf16.msra.mxu0 0
    %582 = vmatprep.subr.bf16.mxu0 0
    %583 = vmatpush1.bf16.msra.mxu0 0
    %584 = vmatprep.mubr.bf16.mxu0 0
    %585 = vmatmul.mubr.bf16.gmra.mrb[0].mxu0 %v550
    %v586 = vpop.f32.mrb[0].mxu0
    %v587 = vadd.f32 0.0, %v586
    %v588 = vpop.f32.mrb[0].mxu0
    %v589 = vadd.f32 0.0, %v588
    %v590 = vpop.f32.mrb[0].mxu0
    %v591 = vpop.f32.mrb[0].mxu0
    %592 = vdwg.mxu0
    %v593 = vmul.f32 %v587, %v55
    %v594 = vmul.f32 %v589, %v56
    %v595 = vpack.c.bf16 %v593, %v593
    %v596 = vpack.c.bf16 %v594, %v594
    %v597 = vld [vmem:[%s2] sm:$0xf]
    %v598 = vld [vmem:[%s2 + $0x4] sm:$0xf]
    %v599 = vld [vmem:[%s2 + $0x8] sm:$0xf]
    %v600 = vld [vmem:[%s2 + $0xc] sm:$0xf]
    %v601 = vld [vmem:[%s2 + $0x10] sm:$0xf]
    %v602 = vld [vmem:[%s2 + $0x14] sm:$0xf]
    %v603 = vld [vmem:[%s2 + $0x18] sm:$0xf]
    %v604 = vld [vmem:[%s2 + $0x1c] sm:$0xf]
    %v605 = vld [vmem:[%s2 + $0x20] sm:$0xf]
    %v606 = vld [vmem:[%s2 + $0x24] sm:$0xf]
    %v607 = vld [vmem:[%s2 + $0x28] sm:$0xf]
    %v608 = vld [vmem:[%s2 + $0x2c] sm:$0xf]
    %v609 = vld [vmem:[%s2 + $0x30] sm:$0xf]
    %v610 = vld [vmem:[%s2 + $0x34] sm:$0xf]
    %v611 = vld [vmem:[%s2 + $0x38] sm:$0xf]
    %v612 = vld [vmem:[%s2 + $0x3c] sm:$0xf]
    %v613 = vld [vmem:[%s2 + $0x40] sm:$0xf]
    %v614 = vld [vmem:[%s2 + $0x44] sm:$0xf]
    %v615 = vld [vmem:[%s2 + $0x48] sm:$0xf]
    %v616 = vld [vmem:[%s2 + $0x4c] sm:$0xf]
    %v617 = vld [vmem:[%s2 + $0x50] sm:$0xf]
    %v618 = vld [vmem:[%s2 + $0x54] sm:$0xf]
    %v619 = vld [vmem:[%s2 + $0x58] sm:$0xf]
    %v620 = vld [vmem:[%s2 + $0x5c] sm:$0xf]
    %v621 = vld [vmem:[%s2 + $0x60] sm:$0xf]
    %v622 = vld [vmem:[%s2 + $0x64] sm:$0xf]
    %v623 = vld [vmem:[%s2 + $0x68] sm:$0xf]
    %v624 = vld [vmem:[%s2 + $0x6c] sm:$0xf]
    %v625 = vld [vmem:[%s2 + $0x70] sm:$0xf]
    %v626 = vld [vmem:[%s2 + $0x74] sm:$0xf]
    %v627 = vld [vmem:[%s2 + $0x78] sm:$0xf]
    %v628 = vld [vmem:[%s2 + $0x7c] sm:$0xf]
    %v661 = vunpack.c.l.b16 %v597
    %v662 = vunpack.c.l.b16 %v598
    %v663 = vunpack.c.l.b16 %v599
    %v664 = vunpack.c.l.b16 %v600
    %v665 = vunpack.c.l.b16 %v601
    %v666 = vunpack.c.l.b16 %v602
    %v667 = vunpack.c.l.b16 %v603
    %v668 = vunpack.c.l.b16 %v604
    %v669 = vunpack.c.l.b16 %v605
    %v670 = vunpack.c.l.b16 %v606
    %v671 = vunpack.c.l.b16 %v607
    %v672 = vunpack.c.l.b16 %v608
    %v673 = vunpack.c.l.b16 %v609
    %v674 = vunpack.c.l.b16 %v610
    %v675 = vunpack.c.l.b16 %v611
    %v676 = vunpack.c.l.b16 %v612
    %v677 = vunpack.c.l.b16 %v613
    %v678 = vunpack.c.l.b16 %v614
    %v679 = vunpack.c.l.b16 %v615
    %v680 = vunpack.c.l.b16 %v616
    %v681 = vunpack.c.l.b16 %v617
    %v682 = vunpack.c.l.b16 %v618
    %v683 = vunpack.c.l.b16 %v619
    %v684 = vunpack.c.l.b16 %v620
    %v685 = vunpack.c.l.b16 %v621
    %v686 = vunpack.c.l.b16 %v622
    %v687 = vunpack.c.l.b16 %v623
    %v688 = vunpack.c.l.b16 %v624
    %v689 = vunpack.c.l.b16 %v625
    %v690 = vunpack.c.l.b16 %v626
    %v691 = vunpack.c.l.b16 %v627
    %v692 = vunpack.c.l.b16 %v628
    %v693 = vpack.c.b16 %v662, %v661
    %v694 = vpack.c.b16 %v664, %v663
    %v695 = vpack.c.b16 %v666, %v665
    %v696 = vpack.c.b16 %v668, %v667
    %v697 = vpack.c.b16 %v670, %v669
    %v698 = vpack.c.b16 %v672, %v671
    %v699 = vpack.c.b16 %v674, %v673
    %v700 = vpack.c.b16 %v676, %v675
    %v701 = vpack.c.b16 %v678, %v677
    %v702 = vpack.c.b16 %v680, %v679
    %v703 = vpack.c.b16 %v682, %v681
    %v704 = vpack.c.b16 %v684, %v683
    %v705 = vpack.c.b16 %v686, %v685
    %v706 = vpack.c.b16 %v688, %v687
    %v707 = vpack.c.b16 %v690, %v689
    %v708 = vpack.c.b16 %v692, %v691
    %725 = vmatprep.subr.bf16.mxu0 0
    %726 = vmatpush1.bf16.msra.mxu0 %v693
    %727 = vmatprep.subr.bf16.mxu0 0
    %728 = vmatpush1.bf16.msra.mxu0 %v694
    %729 = vmatprep.subr.bf16.mxu0 0
    %730 = vmatpush1.bf16.msra.mxu0 %v695
    %731 = vmatprep.subr.bf16.mxu0 0
    %732 = vmatpush1.bf16.msra.mxu0 %v696
    %733 = vmatprep.subr.bf16.mxu0 0
    %734 = vmatpush1.bf16.msra.mxu0 %v697
    %735 = vmatprep.subr.bf16.mxu0 0
    %736 = vmatpush1.bf16.msra.mxu0 %v698
    %737 = vmatprep.subr.bf16.mxu0 0
    %738 = vmatpush1.bf16.msra.mxu0 %v699
    %739 = vmatprep.subr.bf16.mxu0 0
    %740 = vmatpush1.bf16.msra.mxu0 %v700
    %741 = vmatprep.subr.bf16.mxu0 0
    %742 = vmatpush1.bf16.msra.mxu0 %v701
    %743 = vmatprep.subr.bf16.mxu0 0
    %744 = vmatpush1.bf16.msra.mxu0 %v702
    %745 = vmatprep.subr.bf16.mxu0 0
    %746 = vmatpush1.bf16.msra.mxu0 %v703
    %747 = vmatprep.subr.bf16.mxu0 0
    %748 = vmatpush1.bf16.msra.mxu0 %v704
    %749 = vmatprep.subr.bf16.mxu0 0
    %750 = vmatpush1.bf16.msra.mxu0 %v705
    %751 = vmatprep.subr.bf16.mxu0 0
    %752 = vmatpush1.bf16.msra.mxu0 %v706
    %753 = vmatprep.subr.bf16.mxu0 0
    %754 = vmatpush1.bf16.msra.mxu0 %v707
    %755 = vmatprep.subr.bf16.mxu0 0
    %756 = vmatpush1.bf16.msra.mxu0 %v708
    %757 = vmatprep.mubr.bf16.mxu0 %v596
    %758 = vmatmul.mubr.bf16.gmra.mrb[0].mxu0 %v595
    %v759 = vpop.f32.mrb[0].mxu0
    %v760 = vadd.f32 0.0, %v759
    %v761 = vpop.f32.mrb[0].mxu0
    %v762 = vpop.f32.mrb[0].mxu0
    %v763 = vpop.f32.mrb[0].mxu0
    %764 = vdwg.mxu0
    %767 = vrot.lane.b32.xlu0 %v527, 64
    %v768 = vpop.permute.xlu0 %767
    %769 = vrot.lane.b32.xlu0 %v528, 64
    %v770 = vpop.permute.xlu0 %769
    %773 = vmatprep.subr.bf16.mxu0 0
    %774 = vmatpush1.bf16.msra.mxu0 %v768
    %775 = vmatprep.subr.bf16.mxu0 0
    %776 = vmatpush1.bf16.msra.mxu0 %v770
    %777 = vmatprep.subr.bf16.mxu0 0
    %778 = vmatpush1.bf16.msra.mxu0 0
    %779 = vmatprep.subr.bf16.mxu0 0
    %780 = vmatpush1.bf16.msra.mxu0 0
    %781 = vmatprep.subr.bf16.mxu0 0
    %782 = vmatpush1.bf16.msra.mxu0 0
    %783 = vmatprep.subr.bf16.mxu0 0
    %784 = vmatpush1.bf16.msra.mxu0 0
    %785 = vmatprep.subr.bf16.mxu0 0
    %786 = vmatpush1.bf16.msra.mxu0 0
    %787 = vmatprep.subr.bf16.mxu0 0
    %788 = vmatpush1.bf16.msra.mxu0 0
    %789 = vmatprep.subr.bf16.mxu0 0
    %790 = vmatpush1.bf16.msra.mxu0 0
    %791 = vmatprep.subr.bf16.mxu0 0
    %792 = vmatpush1.bf16.msra.mxu0 0
    %793 = vmatprep.subr.bf16.mxu0 0
    %794 = vmatpush1.bf16.msra.mxu0 0
    %795 = vmatprep.subr.bf16.mxu0 0
    %796 = vmatpush1.bf16.msra.mxu0 0
    %797 = vmatprep.subr.bf16.mxu0 0
    %798 = vmatpush1.bf16.msra.mxu0 0
    %799 = vmatprep.subr.bf16.mxu0 0
    %800 = vmatpush1.bf16.msra.mxu0 0
    %801 = vmatprep.subr.bf16.mxu0 0
    %802 = vmatpush1.bf16.msra.mxu0 0
    %803 = vmatprep.subr.bf16.mxu0 0
    %804 = vmatpush1.bf16.msra.mxu0 0
    %805 = vmatprep.mubr.bf16.mxu0 0
    %806 = vmatmul.mubr.bf16.gmra.mrb[0].mxu0 %v550
    %v807 = vpop.f32.mrb[0].mxu0
    %v808 = vadd.f32 %v760, %v807
    %v809 = vpop.f32.mrb[0].mxu0
    %v810 = vpop.f32.mrb[0].mxu0
    %v811 = vpop.f32.mrb[0].mxu0
    %812 = vdwg.mxu0
    %v813 = vmul.f32 %v159, 0.35355338
    %v814 = vmul.f32 %v159, %v168
    %v815 = vmul.f32 %v159, %v170
    %v816 = vmul.f32 %v159, %v172
    %v817 = vmul.f32 %v159, %v174
    %v818 = vmul.f32 %v159, %v184
    %v819 = vmul.f32 %v159, %v186
    %v820 = vmul.f32 %v159, %v188
    %v821 = vmul.f32 %v159, %v190
    %v822 = vpack.c.bf16 %v813, %v813
    %v823 = vpack.c.bf16 %v815, %v814
    %v824 = vpack.c.bf16 %v817, %v816
    %s825 = scalar_lea.vmem %s1, 32
    %v826 = vld [vmem:[%s825] sm:$0xff]
    %v827 = vld [vmem:[%s825 + $0x8] sm:$0xff]
    %v828 = vld [vmem:[%s825 + $0x10] sm:$0xff]
    %v829 = vld [vmem:[%s825 + $0x18] sm:$0xff]
    %v834 = vunpack.c.l.b16 %v826
    %v835 = vunpack.c.h.b16 %v826
    %v836 = vunpack.c.l.b16 %v827
    %v837 = vunpack.c.h.b16 %v827
    %v838 = vunpack.c.l.b16 %v828
    %v839 = vunpack.c.h.b16 %v828
    %v840 = vunpack.c.l.b16 %v829
    %v841 = vunpack.c.h.b16 %v829
    %v842 = vpack.c.b16 %v836, %v834
    %v843 = vpack.c.b16 %v837, %v835
    %v844 = vpack.c.b16 %v840, %v838
    %v845 = vpack.c.b16 %v841, %v839
    %v851 = vsel %vm117, %v822, 0
    %853 = vmatprep.subr.bf16.mxu0 %v843
    %854 = vmatpush1.bf16.msra.mxu0 %v842
    %855 = vmatprep.subr.bf16.mxu0 %v845
    %856 = vmatpush1.bf16.msra.mxu0 %v844
    %857 = vmatprep.subr.bf16.mxu0 0
    %858 = vmatpush1.bf16.msra.mxu0 0
    %859 = vmatprep.subr.bf16.mxu0 0
    %860 = vmatpush1.bf16.msra.mxu0 0
    %861 = vmatprep.subr.bf16.mxu0 0
    %862 = vmatpush1.bf16.msra.mxu0 0
    %863 = vmatprep.subr.bf16.mxu0 0
    %864 = vmatpush1.bf16.msra.mxu0 0
    %865 = vmatprep.subr.bf16.mxu0 0
    %866 = vmatpush1.bf16.msra.mxu0 0
    %867 = vmatprep.subr.bf16.mxu0 0
    %868 = vmatpush1.bf16.msra.mxu0 0
    %869 = vmatprep.subr.bf16.mxu0 0
    %870 = vmatpush1.bf16.msra.mxu0 0
    %871 = vmatprep.subr.bf16.mxu0 0
    %872 = vmatpush1.bf16.msra.mxu0 0
    %873 = vmatprep.subr.bf16.mxu0 0
    %874 = vmatpush1.bf16.msra.mxu0 0
    %875 = vmatprep.subr.bf16.mxu0 0
    %876 = vmatpush1.bf16.msra.mxu0 0
    %877 = vmatprep.subr.bf16.mxu0 0
    %878 = vmatpush1.bf16.msra.mxu0 0
    %879 = vmatprep.subr.bf16.mxu0 0
    %880 = vmatpush1.bf16.msra.mxu0 0
    %881 = vmatprep.subr.bf16.mxu0 0
    %882 = vmatpush1.bf16.msra.mxu0 0
    %883 = vmatprep.subr.bf16.mxu0 0
    %884 = vmatpush1.bf16.msra.mxu0 0
    %885 = vmatprep.mubr.bf16.mxu0 0
    %886 = vmatmul.mubr.bf16.gmra.mrb[0].mxu0 %v851
    %v887 = vpop.f32.mrb[0].mxu0
    %v888 = vadd.f32 0.0, %v887
    %v889 = vpop.f32.mrb[0].mxu0
    %v890 = vadd.f32 0.0, %v889
    %v891 = vpop.f32.mrb[0].mxu0
    %v892 = vpop.f32.mrb[0].mxu0
    %893 = vdwg.mxu0
    %v894 = vmul.f32 %v888, %v55
    %v895 = vmul.f32 %v890, %v56
    %v896 = vpack.c.bf16 %v894, %v894
    %v897 = vpack.c.bf16 %v895, %v895
    %898 = vmatprep.subr.bf16.mxu0 0
    %899 = vmatpush1.bf16.msra.mxu0 %v338
    %900 = vmatprep.subr.bf16.mxu0 0
    %901 = vmatpush1.bf16.msra.mxu0 %v339
    %902 = vmatprep.subr.bf16.mxu0 0
    %903 = vmatpush1.bf16.msra.mxu0 %v340
    %904 = vmatprep.subr.bf16.mxu0 0
    %905 = vmatpush1.bf16.msra.mxu0 %v341
    %906 = vmatprep.subr.bf16.mxu0 0
    %907 = vmatpush1.bf16.msra.mxu0 %v342
    %908 = vmatprep.subr.bf16.mxu0 0
    %909 = vmatpush1.bf16.msra.mxu0 %v343
    %910 = vmatprep.subr.bf16.mxu0 0
    %911 = vmatpush1.bf16.msra.mxu0 %v344
    %912 = vmatprep.subr.bf16.mxu0 0
    %913 = vmatpush1.bf16.msra.mxu0 %v345
    %914 = vmatprep.subr.bf16.mxu0 0
    %915 = vmatpush1.bf16.msra.mxu0 %v346
    %916 = vmatprep.subr.bf16.mxu0 0
    %917 = vmatpush1.bf16.msra.mxu0 %v347
    %918 = vmatprep.subr.bf16.mxu0 0
    %919 = vmatpush1.bf16.msra.mxu0 %v348
    %920 = vmatprep.subr.bf16.mxu0 0
    %921 = vmatpush1.bf16.msra.mxu0 %v349
    %922 = vmatprep.subr.bf16.mxu0 0
    %923 = vmatpush1.bf16.msra.mxu0 %v350
    %924 = vmatprep.subr.bf16.mxu0 0
    %925 = vmatpush1.bf16.msra.mxu0 %v351
    %926 = vmatprep.subr.bf16.mxu0 0
    %927 = vmatpush1.bf16.msra.mxu0 %v352
    %928 = vmatprep.subr.bf16.mxu0 0
    %929 = vmatpush1.bf16.msra.mxu0 %v353
    %930 = vmatprep.mubr.bf16.mxu0 %v897
    %931 = vmatmul.mubr.bf16.gmra.mrb[0].mxu0 %v896
    %v932 = vpop.f32.mrb[0].mxu0
    %v933 = vadd.f32 0.0, %v932
    %v934 = vpop.f32.mrb[0].mxu0
    %v935 = vpop.f32.mrb[0].mxu0
    %v936 = vpop.f32.mrb[0].mxu0
    %937 = vdwg.mxu0
    %940 = vrot.lane.b32.xlu0 %v823, 96
    %v941 = vpop.permute.xlu0 %940
    %942 = vrot.lane.b32.xlu0 %v824, 96
    %v943 = vpop.permute.xlu0 %942
    %v945 = vsel %vm117, %v941, 0
    %v948 = vsel %vm117, %v943, 0
    %950 = vmatprep.subr.bf16.mxu0 0
    %951 = vmatpush1.bf16.xpose.msra.mxu0 %v945
    %952 = vmatprep.subr.bf16.mxu0 0
    %953 = vmatpush1.bf16.xpose.msra.mxu0 %v948
    %954 = vmatprep.subr.bf16.mxu0 0
    %955 = vmatpush1.bf16.xpose.msra.mxu0 0
    %956 = vmatprep.subr.bf16.mxu0 0
    %957 = vmatpush1.bf16.xpose.msra.mxu0 0
    %958 = vmatprep.subr.bf16.mxu0 0
    %959 = vmatpush1.bf16.xpose.msra.mxu0 0
    %960 = vmatprep.subr.bf16.mxu0 0
    %961 = vmatpush1.bf16.xpose.msra.mxu0 0
    %962 = vmatprep.subr.bf16.mxu0 0
    %963 = vmatpush1.bf16.xpose.msra.mxu0 0
    %964 = vmatprep.subr.bf16.mxu0 0
    %965 = vmatpush1.bf16.xpose.msra.mxu0 0
    %966 = vmatprep.subr.bf16.mxu0 0
    %967 = vmatpush1.bf16.xpose.msra.mxu0 0
    %968 = vmatprep.subr.bf16.mxu0 0
    %969 = vmatpush1.bf16.xpose.msra.mxu0 0
    %970 = vmatprep.subr.bf16.mxu0 0
    %971 = vmatpush1.bf16.xpose.msra.mxu0 0
    %972 = vmatprep.subr.bf16.mxu0 0
    %973 = vmatpush1.bf16.xpose.msra.mxu0 0
    %974 = vmatprep.subr.bf16.mxu0 0
    %975 = vmatpush1.bf16.xpose.msra.mxu0 0
    %976 = vmatprep.subr.bf16.mxu0 0
    %977 = vmatpush1.bf16.xpose.msra.mxu0 0
    %978 = vmatprep.subr.bf16.mxu0 0
    %979 = vmatpush1.bf16.xpose.msra.mxu0 0
    %980 = vmatprep.subr.bf16.mxu0 0
    %981 = vmatpush1.bf16.xpose.msra.mxu0 0
    %982 = vmatprep.mubr.bf16.mxu0 0
    %983 = vmatmul.mubr.bf16.gmra.mrb[0].mxu0 %v851
    %v984 = vpop.f32.mrb[0].mxu0
    %v985 = vadd.f32 %v933, %v984
    %v986 = vpop.f32.mrb[0].mxu0
    %v987 = vpop.f32.mrb[0].mxu0
    %v988 = vpop.f32.mrb[0].mxu0
    %989 = vdwg.mxu0
    %v990 = vsel %vm117, %v985, -inf
    %991 = vmax.xlane.f32.xlu0 %v990
    %v992 = vpop.xlane.xlu0 %991
    %v993 = vsub.f32 %v985, %v992
    %v994 = vmul.f32 %v993, 1.442695
    %v995 = vpow.pop %v994
    %v996 = vpack.c.bf16 %v995, %v995
    %v998 = vsel %vm117, %v996, 0
    %1000 = vmatprep.subr.bf16.mxu0 0
    %1001 = vmatpush1.bf16.msra.mxu0 %v477
    %1002 = vmatprep.subr.bf16.mxu0 0
    %1003 = vmatpush1.bf16.msra.mxu0 %v478
    %1004 = vmatprep.subr.bf16.mxu0 0
    %1005 = vmatpush1.bf16.msra.mxu0 0
    %1006 = vmatprep.subr.bf16.mxu0 0
    %1007 = vmatpush1.bf16.msra.mxu0 0
    %1008 = vmatprep.subr.bf16.mxu0 0
    %1009 = vmatpush1.bf16.msra.mxu0 0
    %1010 = vmatprep.subr.bf16.mxu0 0
    %1011 = vmatpush1.bf16.msra.mxu0 0
    %1012 = vmatprep.subr.bf16.mxu0 0
    %1013 = vmatpush1.bf16.msra.mxu0 0
    %1014 = vmatprep.subr.bf16.mxu0 0
    %1015 = vmatpush1.bf16.msra.mxu0 0
    %1016 = vmatprep.subr.bf16.mxu0 0
    %1017 = vmatpush1.bf16.msra.mxu0 0
    %1018 = vmatprep.subr.bf16.mxu0 0
    %1019 = vmatpush1.bf16.msra.mxu0 0
    %1020 = vmatprep.subr.bf16.mxu0 0
    %1021 = vmatpush1.bf16.msra.mxu0 0
    %1022 = vmatprep.subr.bf16.mxu0 0
    %1023 = vmatpush1.bf16.msra.mxu0 0
    %1024 = vmatprep.subr.bf16.mxu0 0
    %1025 = vmatpush1.bf16.msra.mxu0 0
    %1026 = vmatprep.subr.bf16.mxu0 0
    %1027 = vmatpush1.bf16.msra.mxu0 0
    %1028 = vmatprep.subr.bf16.mxu0 0
    %1029 = vmatpush1.bf16.msra.mxu0 0
    %1030 = vmatprep.subr.bf16.mxu0 0
    %1031 = vmatpush1.bf16.msra.mxu0 0
    %1032 = vmatprep.mubr.bf16.mxu0 0
    %1033 = vmatmul.mubr.bf16.gmra.mrb[0].mxu0 %v998
    %v1034 = vpop.f32.mrb[0].mxu0
    %v1035 = vadd.f32 0.0, %v1034
    %v1036 = vpop.f32.mrb[0].mxu0
    %v1037 = vpop.f32.mrb[0].mxu0
    %v1038 = vpop.f32.mrb[0].mxu0
    %1039 = vdwg.mxu0
    %v1040 = vrcp.pop %v1035
    %v1041 = vmul.f32 %v995, %v1040
    %v1042 = vpack.c.bf16 %v1041, %v1041
    %v1043 = vpack.c.bf16 %v819, %v818
    %v1044 = vpack.c.bf16 %v821, %v820
    %v1046 = vsel %vm117, %v1042, 0
    %1048 = vmatprep.subr.bf16.mxu0 %v542
    %1049 = vmatpush1.bf16.msra.mxu0 %v541
    %1050 = vmatprep.subr.bf16.mxu0 %v544
    %1051 = vmatpush1.bf16.msra.mxu0 %v543
    %1052 = vmatprep.subr.bf16.mxu0 0
    %1053 = vmatpush1.bf16.msra.mxu0 0
    %1054 = vmatprep.subr.bf16.mxu0 0
    %1055 = vmatpush1.bf16.msra.mxu0 0
    %1056 = vmatprep.subr.bf16.mxu0 0
    %1057 = vmatpush1.bf16.msra.mxu0 0
    %1058 = vmatprep.subr.bf16.mxu0 0
    %1059 = vmatpush1.bf16.msra.mxu0 0
    %1060 = vmatprep.subr.bf16.mxu0 0
    %1061 = vmatpush1.bf16.msra.mxu0 0
    %1062 = vmatprep.subr.bf16.mxu0 0
    %1063 = vmatpush1.bf16.msra.mxu0 0
    %1064 = vmatprep.subr.bf16.mxu0 0
    %1065 = vmatpush1.bf16.msra.mxu0 0
    %1066 = vmatprep.subr.bf16.mxu0 0
    %1067 = vmatpush1.bf16.msra.mxu0 0
    %1068 = vmatprep.subr.bf16.mxu0 0
    %1069 = vmatpush1.bf16.msra.mxu0 0
    %1070 = vmatprep.subr.bf16.mxu0 0
    %1071 = vmatpush1.bf16.msra.mxu0 0
    %1072 = vmatprep.subr.bf16.mxu0 0
    %1073 = vmatpush1.bf16.msra.mxu0 0
    %1074 = vmatprep.subr.bf16.mxu0 0
    %1075 = vmatpush1.bf16.msra.mxu0 0
    %1076 = vmatprep.subr.bf16.mxu0 0
    %1077 = vmatpush1.bf16.msra.mxu0 0
    %1078 = vmatprep.subr.bf16.mxu0 0
    %1079 = vmatpush1.bf16.msra.mxu0 0
    %1080 = vmatprep.mubr.bf16.mxu0 0
    %1081 = vmatmul.mubr.bf16.gmra.mrb[0].mxu0 %v1046
    %v1082 = vpop.f32.mrb[0].mxu0
    %v1083 = vadd.f32 0.0, %v1082
    %v1084 = vpop.f32.mrb[0].mxu0
    %v1085 = vadd.f32 0.0, %v1084
    %v1086 = vpop.f32.mrb[0].mxu0
    %v1087 = vpop.f32.mrb[0].mxu0
    %1088 = vdwg.mxu0
    %v1089 = vmul.f32 %v1083, %v55
    %v1090 = vmul.f32 %v1085, %v56
    %v1091 = vpack.c.bf16 %v1089, %v1089
    %v1092 = vpack.c.bf16 %v1090, %v1090
    %s1093 = scalar_lea.vmem %s2, 128
    %v1094 = vld [vmem:[%s1093] sm:$0xf]
    %v1095 = vld [vmem:[%s1093 + $0x4] sm:$0xf]
    %v1096 = vld [vmem:[%s1093 + $0x8] sm:$0xf]
    %v1097 = vld [vmem:[%s1093 + $0xc] sm:$0xf]
    %v1098 = vld [vmem:[%s1093 + $0x10] sm:$0xf]
    %v1099 = vld [vmem:[%s1093 + $0x14] sm:$0xf]
    %v1100 = vld [vmem:[%s1093 + $0x18] sm:$0xf]
    %v1101 = vld [vmem:[%s1093 + $0x1c] sm:$0xf]
    %v1102 = vld [vmem:[%s1093 + $0x20] sm:$0xf]
    %v1103 = vld [vmem:[%s1093 + $0x24] sm:$0xf]
    %v1104 = vld [vmem:[%s1093 + $0x28] sm:$0xf]
    %v1105 = vld [vmem:[%s1093 + $0x2c] sm:$0xf]
    %v1106 = vld [vmem:[%s1093 + $0x30] sm:$0xf]
    %v1107 = vld [vmem:[%s1093 + $0x34] sm:$0xf]
    %v1108 = vld [vmem:[%s1093 + $0x38] sm:$0xf]
    %v1109 = vld [vmem:[%s1093 + $0x3c] sm:$0xf]
    %v1110 = vld [vmem:[%s1093 + $0x40] sm:$0xf]
    %v1111 = vld [vmem:[%s1093 + $0x44] sm:$0xf]
    %v1112 = vld [vmem:[%s1093 + $0x48] sm:$0xf]
    %v1113 = vld [vmem:[%s1093 + $0x4c] sm:$0xf]
    %v1114 = vld [vmem:[%s1093 + $0x50] sm:$0xf]
    %v1115 = vld [vmem:[%s1093 + $0x54] sm:$0xf]
    %v1116 = vld [vmem:[%s1093 + $0x58] sm:$0xf]
    %v1117 = vld [vmem:[%s1093 + $0x5c] sm:$0xf]
    %v1118 = vld [vmem:[%s1093 + $0x60] sm:$0xf]
    %v1119 = vld [vmem:[%s1093 + $0x64] sm:$0xf]
    %v1120 = vld [vmem:[%s1093 + $0x68] sm:$0xf]
    %v1121 = vld [vmem:[%s1093 + $0x6c] sm:$0xf]
    %v1122 = vld [vmem:[%s1093 + $0x70] sm:$0xf]
    %v1123 = vld [vmem:[%s1093 + $0x74] sm:$0xf]
    %v1124 = vld [vmem:[%s1093 + $0x78] sm:$0xf]
    %v1125 = vld [vmem:[%s1093 + $0x7c] sm:$0xf]
    %v1158 = vunpack.c.l.b16 %v1094
    %v1159 = vunpack.c.l.b16 %v1095
    %v1160 = vunpack.c.l.b16 %v1096
    %v1161 = vunpack.c.l.b16 %v1097
    %v1162 = vunpack.c.l.b16 %v1098
    %v1163 = vunpack.c.l.b16 %v1099
    %v1164 = vunpack.c.l.b16 %v1100
    %v1165 = vunpack.c.l.b16 %v1101
    %v1166 = vunpack.c.l.b16 %v1102
    %v1167 = vunpack.c.l.b16 %v1103
    %v1168 = vunpack.c.l.b16 %v1104
    %v1169 = vunpack.c.l.b16 %v1105
    %v1170 = vunpack.c.l.b16 %v1106
    %v1171 = vunpack.c.l.b16 %v1107
    %v1172 = vunpack.c.l.b16 %v1108
    %v1173 = vunpack.c.l.b16 %v1109
    %v1174 = vunpack.c.l.b16 %v1110
    %v1175 = vunpack.c.l.b16 %v1111
    %v1176 = vunpack.c.l.b16 %v1112
    %v1177 = vunpack.c.l.b16 %v1113
    %v1178 = vunpack.c.l.b16 %v1114
    %v1179 = vunpack.c.l.b16 %v1115
    %v1180 = vunpack.c.l.b16 %v1116
    %v1181 = vunpack.c.l.b16 %v1117
    %v1182 = vunpack.c.l.b16 %v1118
    %v1183 = vunpack.c.l.b16 %v1119
    %v1184 = vunpack.c.l.b16 %v1120
    %v1185 = vunpack.c.l.b16 %v1121
    %v1186 = vunpack.c.l.b16 %v1122
    %v1187 = vunpack.c.l.b16 %v1123
    %v1188 = vunpack.c.l.b16 %v1124
    %v1189 = vunpack.c.l.b16 %v1125
    %v1190 = vpack.c.b16 %v1159, %v1158
    %v1191 = vpack.c.b16 %v1161, %v1160
    %v1192 = vpack.c.b16 %v1163, %v1162
    %v1193 = vpack.c.b16 %v1165, %v1164
    %v1194 = vpack.c.b16 %v1167, %v1166
    %v1195 = vpack.c.b16 %v1169, %v1168
    %v1196 = vpack.c.b16 %v1171, %v1170
    %v1197 = vpack.c.b16 %v1173, %v1172
    %v1198 = vpack.c.b16 %v1175, %v1174
    %v1199 = vpack.c.b16 %v1177, %v1176
    %v1200 = vpack.c.b16 %v1179, %v1178
    %v1201 = vpack.c.b16 %v1181, %v1180
    %v1202 = vpack.c.b16 %v1183, %v1182
    %v1203 = vpack.c.b16 %v1185, %v1184
    %v1204 = vpack.c.b16 %v1187, %v1186
    %v1205 = vpack.c.b16 %v1189, %v1188
    %1222 = vmatprep.subr.bf16.mxu0 0
    %1223 = vmatpush1.bf16.msra.mxu0 %v1190
    %1224 = vmatprep.subr.bf16.mxu0 0
    %1225 = vmatpush1.bf16.msra.mxu0 %v1191
    %1226 = vmatprep.subr.bf16.mxu0 0
    %1227 = vmatpush1.bf16.msra.mxu0 %v1192
    %1228 = vmatprep.subr.bf16.mxu0 0
    %1229 = vmatpush1.bf16.msra.mxu0 %v1193
    %1230 = vmatprep.subr.bf16.mxu0 0
    %1231 = vmatpush1.bf16.msra.mxu0 %v1194
    %1232 = vmatprep.subr.bf16.mxu0 0
    %1233 = vmatpush1.bf16.msra.mxu0 %v1195
    %1234 = vmatprep.subr.bf16.mxu0 0
    %1235 = vmatpush1.bf16.msra.mxu0 %v1196
    %1236 = vmatprep.subr.bf16.mxu0 0
    %1237 = vmatpush1.bf16.msra.mxu0 %v1197
    %1238 = vmatprep.subr.bf16.mxu0 0
    %1239 = vmatpush1.bf16.msra.mxu0 %v1198
    %1240 = vmatprep.subr.bf16.mxu0 0
    %1241 = vmatpush1.bf16.msra.mxu0 %v1199
    %1242 = vmatprep.subr.bf16.mxu0 0
    %1243 = vmatpush1.bf16.msra.mxu0 %v1200
    %1244 = vmatprep.subr.bf16.mxu0 0
    %1245 = vmatpush1.bf16.msra.mxu0 %v1201
    %1246 = vmatprep.subr.bf16.mxu0 0
    %1247 = vmatpush1.bf16.msra.mxu0 %v1202
    %1248 = vmatprep.subr.bf16.mxu0 0
    %1249 = vmatpush1.bf16.msra.mxu0 %v1203
    %1250 = vmatprep.subr.bf16.mxu0 0
    %1251 = vmatpush1.bf16.msra.mxu0 %v1204
    %1252 = vmatprep.subr.bf16.mxu0 0
    %1253 = vmatpush1.bf16.msra.mxu0 %v1205
    %1254 = vmatprep.mubr.bf16.mxu0 %v1092
    %1255 = vmatmul.mubr.bf16.gmra.mrb[0].mxu0 %v1091
    %v1256 = vpop.f32.mrb[0].mxu0
    %v1257 = vadd.f32 0.0, %v1256
    %v1258 = vpop.f32.mrb[0].mxu0
    %v1259 = vpop.f32.mrb[0].mxu0
    %v1260 = vpop.f32.mrb[0].mxu0
    %1261 = vdwg.mxu0
    %1264 = vrot.lane.b32.xlu0 %v1043, 64
    %v1265 = vpop.permute.xlu0 %1264
    %1266 = vrot.lane.b32.xlu0 %v1044, 64
    %v1267 = vpop.permute.xlu0 %1266
    %1270 = vmatprep.subr.bf16.mxu0 0
    %1271 = vmatpush1.bf16.msra.mxu0 %v1265
    %1272 = vmatprep.subr.bf16.mxu0 0
    %1273 = vmatpush1.bf16.msra.mxu0 %v1267
    %1274 = vmatprep.subr.bf16.mxu0 0
    %1275 = vmatpush1.bf16.msra.mxu0 0
    %1276 = vmatprep.subr.bf16.mxu0 0
    %1277 = vmatpush1.bf16.msra.mxu0 0
    %1278 = vmatprep.subr.bf16.mxu0 0
    %1279 = vmatpush1.bf16.msra.mxu0 0
    %1280 = vmatprep.subr.bf16.mxu0 0
    %1281 = vmatpush1.bf16.msra.mxu0 0
    %1282 = vmatprep.subr.bf16.mxu0 0
    %1283 = vmatpush1.bf16.msra.mxu0 0
    %1284 = vmatprep.subr.bf16.mxu0 0
    %1285 = vmatpush1.bf16.msra.mxu0 0
    %1286 = vmatprep.subr.bf16.mxu0 0
    %1287 = vmatpush1.bf16.msra.mxu0 0
    %1288 = vmatprep.subr.bf16.mxu0 0
    %1289 = vmatpush1.bf16.msra.mxu0 0
    %1290 = vmatprep.subr.bf16.mxu0 0
    %1291 = vmatpush1.bf16.msra.mxu0 0
    %1292 = vmatprep.subr.bf16.mxu0 0
    %1293 = vmatpush1.bf16.msra.mxu0 0
    %1294 = vmatprep.subr.bf16.mxu0 0
    %1295 = vmatpush1.bf16.msra.mxu0 0
    %1296 = vmatprep.subr.bf16.mxu0 0
    %1297 = vmatpush1.bf16.msra.mxu0 0
    %1298 = vmatprep.subr.bf16.mxu0 0
    %1299 = vmatpush1.bf16.msra.mxu0 0
    %1300 = vmatprep.subr.bf16.mxu0 0
    %1301 = vmatpush1.bf16.msra.mxu0 0
    %1302 = vmatprep.mubr.bf16.mxu0 0
    %1303 = vmatmul.mubr.bf16.gmra.mrb[0].mxu0 %v1046
    %v1304 = vpop.f32.mrb[0].mxu0
    %v1305 = vadd.f32 %v1257, %v1304
    %v1306 = vpop.f32.mrb[0].mxu0
    %v1307 = vpop.f32.mrb[0].mxu0
    %v1308 = vpop.f32.mrb[0].mxu0
    %1309 = vdwg.mxu0
    %v1310 = vpack.c.bf16 %v1305, %v808
    %v1311 = vld [vmem:[%s4] sm:$0xf]
    %v1312 = vld [vmem:[%s4 + $0x4] sm:$0xf]
    %v1313 = vld [vmem:[%s4 + $0x8] sm:$0xf]
    %v1314 = vld [vmem:[%s4 + $0xc] sm:$0xf]
    %v1315 = vlaneseq
    %v1316 = vshrl.u32 %v1315, 7
    %v1317 = vsub.s32 1, %v1316
    %v1318 = vrot.slane %v46, %v1317
    %v1323 = vunpack.c.l.b16 %v1311
    %v1324 = vunpack.c.l.b16 %v1312
    %v1325 = vunpack.c.l.b16 %v1313
    %v1326 = vunpack.c.l.b16 %v1314
    %v1327 = vpack.c.b16 %v1324, %v1323
    %v1328 = vpack.c.b16 %v1326, %v1325
    %v1332 = vsel %vm117, %v1310, 0
    %1334 = vmatprep.subr.bf16.mxu0 0
    %1335 = vmatpush1.bf16.msra.mxu0 %v1327
    %1336 = vmatprep.subr.bf16.mxu0 0
    %1337 = vmatpush1.bf16.msra.mxu0 %v1328
    %1338 = vmatprep.subr.bf16.mxu0 0
    %1339 = vmatpush1.bf16.msra.mxu0 0
    %1340 = vmatprep.subr.bf16.mxu0 0
    %1341 = vmatpush1.bf16.msra.mxu0 0
    %1342 = vmatprep.subr.bf16.mxu0 0
    %1343 = vmatpush1.bf16.msra.mxu0 0
    %1344 = vmatprep.subr.bf16.mxu0 0
    %1345 = vmatpush1.bf16.msra.mxu0 0
    %1346 = vmatprep.subr.bf16.mxu0 0
    %1347 = vmatpush1.bf16.msra.mxu0 0
    %1348 = vmatprep.subr.bf16.mxu0 0
    %1349 = vmatpush1.bf16.msra.mxu0 0
    %1350 = vmatprep.subr.bf16.mxu0 0
    %1351 = vmatpush1.bf16.msra.mxu0 0
    %1352 = vmatprep.subr.bf16.mxu0 0
    %1353 = vmatpush1.bf16.msra.mxu0 0
    %1354 = vmatprep.subr.bf16.mxu0 0
    %1355 = vmatpush1.bf16.msra.mxu0 0
    %1356 = vmatprep.subr.bf16.mxu0 0
    %1357 = vmatpush1.bf16.msra.mxu0 0
    %1358 = vmatprep.subr.bf16.mxu0 0
    %1359 = vmatpush1.bf16.msra.mxu0 0
    %1360 = vmatprep.subr.bf16.mxu0 0
    %1361 = vmatpush1.bf16.msra.mxu0 0
    %1362 = vmatprep.subr.bf16.mxu0 0
    %1363 = vmatpush1.bf16.msra.mxu0 0
    %1364 = vmatprep.subr.bf16.mxu0 0
    %1365 = vmatpush1.bf16.msra.mxu0 0
    %1366 = vmatprep.mubr.bf16.mxu0 0
    %1367 = vmatmul.mubr.bf16.gmra.mrb[0].mxu0 %v1332
    %v1368 = vpop.f32.mrb[0].mxu0
    %v1369 = vadd.f32 %v1318, %v1368
    %v1370 = vpop.f32.mrb[0].mxu0
    %v1371 = vpop.f32.mrb[0].mxu0
    %v1372 = vadd.f32 %v1318, %v1371
    %v1373 = vpop.f32.mrb[0].mxu0
    %1374 = vdwg.mxu0
    %v1375 = vadd.f32 %v93, %v1369
    %v1376 = vadd.f32 %v95, %v1372
    %v1377 = vsel %vm117, %v1375, 0.0
    %1378 = vadd.xlane.f32.xlu0 %v1377
    %v1379 = vpop.xlane.xlu0 %1378
    %v1380 = vsel %vm117, %v1376, 0.0
    %1381 = vadd.xlane.f32.xlu0 %v1380
    %v1382 = vpop.xlane.xlu0 %1381
    %v1383 = vrcp.pop 32.0
    %v1384 = vmul.f32 %v1379, %v1383
    %v1385 = vmul.f32 %v1382, %v1383
    %v1386 = vsub.f32 %v1375, %v1384
    %v1387 = vsub.f32 %v1376, %v1385
    %v1388 = vmul.f32 %v1386, %v1386
    %v1389 = vmul.f32 %v1387, %v1387
    %v1390 = vsel %vm117, %v1388, 0.0
    %1391 = vadd.xlane.f32.xlu0 %v1390
    %v1392 = vpop.xlane.xlu0 %1391
    %v1393 = vsel %vm117, %v1389, 0.0
    %1394 = vadd.xlane.f32.xlu0 %v1393
    %v1395 = vpop.xlane.xlu0 %1394
    %v1396 = vmul.f32 %v1392, %v1383
    %v1397 = vmul.f32 %v1395, %v1383
    %v1398 = vadd.f32 %v1396, 1e-05
    %v1399 = vadd.f32 %v1397, 1e-05
    %v1400 = vrsqrt.pop %v1398
    %v1401 = vrsqrt.pop %v1399
    %v1402 = vmul.f32 %v1386, %v1400
    %v1403 = vmul.f32 %v1387, %v1401
    %v1404 = vlaneseq
    %v1405 = vshrl.u32 %v1404, 7
    %v1406 = vsub.s32 2, %v1405
    %v1407 = vrot.slane %v46, %v1406
    %v1408 = vmul.f32 %v1402, %v1407
    %v1409 = vmul.f32 %v1403, %v1407
    %v1410 = vlaneseq
    %v1411 = vshrl.u32 %v1410, 7
    %v1412 = vsub.s32 3, %v1411
    %v1413 = vrot.slane %v46, %v1412
    %v1414 = vadd.f32 %v1408, %v1413
    %v1415 = vadd.f32 %v1409, %v1413
    %v1416 = vpack.c.bf16 %v1415, %v1414
    %v1417 = vld [vmem:[%s5] sm:$0xf]
    %v1418 = vld [vmem:[%s5 + $0x4] sm:$0xf]
    %v1419 = vld [vmem:[%s5 + $0x8] sm:$0xf]
    %v1420 = vld [vmem:[%s5 + $0xc] sm:$0xf]
    %v1421 = vlaneseq
    %v1422 = vshrl.u32 %v1421, 7
    %v1423 = vsub.s32 4, %v1422
    %v1424 = vrot.slane %v46, %v1423
    %v1429 = vunpack.c.l.b16 %v1417
    %v1430 = vunpack.c.l.b16 %v1418
    %v1431 = vunpack.c.l.b16 %v1419
    %v1432 = vunpack.c.l.b16 %v1420
    %v1433 = vpack.c.b16 %v1430, %v1429
    %v1434 = vpack.c.b16 %v1432, %v1431
    %v1438 = vsel %vm117, %v1416, 0
    %1440 = vmatprep.subr.bf16.mxu0 0
    %1441 = vmatpush1.bf16.msra.mxu0 %v1433
    %1442 = vmatprep.subr.bf16.mxu0 0
    %1443 = vmatpush1.bf16.msra.mxu0 %v1434
    %1444 = vmatprep.subr.bf16.mxu0 0
    %1445 = vmatpush1.bf16.msra.mxu0 0
    %1446 = vmatprep.subr.bf16.mxu0 0
    %1447 = vmatpush1.bf16.msra.mxu0 0
    %1448 = vmatprep.subr.bf16.mxu0 0
    %1449 = vmatpush1.bf16.msra.mxu0 0
    %1450 = vmatprep.subr.bf16.mxu0 0
    %1451 = vmatpush1.bf16.msra.mxu0 0
    %1452 = vmatprep.subr.bf16.mxu0 0
    %1453 = vmatpush1.bf16.msra.mxu0 0
    %1454 = vmatprep.subr.bf16.mxu0 0
    %1455 = vmatpush1.bf16.msra.mxu0 0
    %1456 = vmatprep.subr.bf16.mxu0 0
    %1457 = vmatpush1.bf16.msra.mxu0 0
    %1458 = vmatprep.subr.bf16.mxu0 0
    %1459 = vmatpush1.bf16.msra.mxu0 0
    %1460 = vmatprep.subr.bf16.mxu0 0
    %1461 = vmatpush1.bf16.msra.mxu0 0
    %1462 = vmatprep.subr.bf16.mxu0 0
    %1463 = vmatpush1.bf16.msra.mxu0 0
    %1464 = vmatprep.subr.bf16.mxu0 0
    %1465 = vmatpush1.bf16.msra.mxu0 0
    %1466 = vmatprep.subr.bf16.mxu0 0
    %1467 = vmatpush1.bf16.msra.mxu0 0
    %1468 = vmatprep.subr.bf16.mxu0 0
    %1469 = vmatpush1.bf16.msra.mxu0 0
    %1470 = vmatprep.subr.bf16.mxu0 0
    %1471 = vmatpush1.bf16.msra.mxu0 0
    %1472 = vmatprep.mubr.bf16.mxu0 0
    %1473 = vmatmul.mubr.bf16.gmra.mrb[0].mxu0 %v1438
    %v1474 = vpop.f32.mrb[0].mxu0
    %v1475 = vadd.f32 %v1424, %v1474
    %v1476 = vpop.f32.mrb[0].mxu0
    %v1477 = vpop.f32.mrb[0].mxu0
    %v1478 = vadd.f32 %v1424, %v1477
    %v1479 = vpop.f32.mrb[0].mxu0
    %1480 = vdwg.mxu0
    %v1481 = vmax.f32 %v1475, 0.0
    %v1482 = vmax.f32 %v1478, 0.0
    %v1483 = vpack.c.bf16 %v1482, %v1481
    %v1484 = vld [vmem:[%s6] sm:$0xf]
    %v1485 = vld [vmem:[%s6 + $0x4] sm:$0xf]
    %v1486 = vld [vmem:[%s6 + $0x8] sm:$0xf]
    %v1487 = vld [vmem:[%s6 + $0xc] sm:$0xf]
    %v1488 = vld [vmem:[%s6 + $0x10] sm:$0xf]
    %v1489 = vld [vmem:[%s6 + $0x14] sm:$0xf]
    %v1490 = vld [vmem:[%s6 + $0x18] sm:$0xf]
    %v1491 = vld [vmem:[%s6 + $0x1c] sm:$0xf]
    %v1492 = vlaneseq
    %v1493 = vshrl.u32 %v1492, 7
    %v1494 = vsub.s32 5, %v1493
    %v1495 = vrot.slane %v46, %v1494
    %v1504 = vunpack.c.l.b16 %v1484
    %v1505 = vunpack.c.l.b16 %v1485
    %v1506 = vunpack.c.l.b16 %v1486
    %v1507 = vunpack.c.l.b16 %v1487
    %v1508 = vunpack.c.l.b16 %v1488
    %v1509 = vunpack.c.l.b16 %v1489
    %v1510 = vunpack.c.l.b16 %v1490
    %v1511 = vunpack.c.l.b16 %v1491
    %v1512 = vpack.c.b16 %v1505, %v1504
    %v1513 = vpack.c.b16 %v1507, %v1506
    %v1514 = vpack.c.b16 %v1509, %v1508
    %v1515 = vpack.c.b16 %v1511, %v1510
    %vm1520 = vcmask 523264
    %v1522 = vsel %vm1520, %v1483, 0
    %1524 = vmatprep.subr.bf16.mxu0 0
    %1525 = vmatpush1.bf16.msra.mxu0 %v1512
    %1526 = vmatprep.subr.bf16.mxu0 0
    %1527 = vmatpush1.bf16.msra.mxu0 %v1513
    %1528 = vmatprep.subr.bf16.mxu0 0
    %1529 = vmatpush1.bf16.msra.mxu0 %v1514
    %1530 = vmatprep.subr.bf16.mxu0 0
    %1531 = vmatpush1.bf16.msra.mxu0 %v1515
    %1532 = vmatprep.subr.bf16.mxu0 0
    %1533 = vmatpush1.bf16.msra.mxu0 0
    %1534 = vmatprep.subr.bf16.mxu0 0
    %1535 = vmatpush1.bf16.msra.mxu0 0
    %1536 = vmatprep.subr.bf16.mxu0 0
    %1537 = vmatpush1.bf16.msra.mxu0 0
    %1538 = vmatprep.subr.bf16.mxu0 0
    %1539 = vmatpush1.bf16.msra.mxu0 0
    %1540 = vmatprep.subr.bf16.mxu0 0
    %1541 = vmatpush1.bf16.msra.mxu0 0
    %1542 = vmatprep.subr.bf16.mxu0 0
    %1543 = vmatpush1.bf16.msra.mxu0 0
    %1544 = vmatprep.subr.bf16.mxu0 0
    %1545 = vmatpush1.bf16.msra.mxu0 0
    %1546 = vmatprep.subr.bf16.mxu0 0
    %1547 = vmatpush1.bf16.msra.mxu0 0
    %1548 = vmatprep.subr.bf16.mxu0 0
    %1549 = vmatpush1.bf16.msra.mxu0 0
    %1550 = vmatprep.subr.bf16.mxu0 0
    %1551 = vmatpush1.bf16.msra.mxu0 0
    %1552 = vmatprep.subr.bf16.mxu0 0
    %1553 = vmatpush1.bf16.msra.mxu0 0
    %1554 = vmatprep.subr.bf16.mxu0 0
    %1555 = vmatpush1.bf16.msra.mxu0 0
    %1556 = vmatprep.mubr.bf16.mxu0 0
    %1557 = vmatmul.mubr.bf16.gmra.mrb[0].mxu0 %v1522
    %v1558 = vpop.f32.mrb[0].mxu0
    %v1559 = vadd.f32 %v1495, %v1558
    %v1560 = vpop.f32.mrb[0].mxu0
    %v1561 = vpop.f32.mrb[0].mxu0
    %v1562 = vadd.f32 %v1495, %v1561
    %v1563 = vpop.f32.mrb[0].mxu0
    %1564 = vdwg.mxu0
    %v1565 = vadd.f32 %v1414, %v1559
    %v1566 = vadd.f32 %v1415, %v1562
    %v1567 = vsel %vm117, %v1565, 0.0
    %1568 = vadd.xlane.f32.xlu0 %v1567
    %v1569 = vpop.xlane.xlu0 %1568
    %v1570 = vsel %vm117, %v1566, 0.0
    %1571 = vadd.xlane.f32.xlu0 %v1570
    %v1572 = vpop.xlane.xlu0 %1571
    %v1573 = vmul.f32 %v1569, %v1383
    %v1574 = vmul.f32 %v1572, %v1383
    %v1575 = vsub.f32 %v1565, %v1573
    %v1576 = vsub.f32 %v1566, %v1574
    %v1577 = vmul.f32 %v1575, %v1575
    %v1578 = vmul.f32 %v1576, %v1576
    %v1579 = vsel %vm117, %v1577, 0.0
    %1580 = vadd.xlane.f32.xlu0 %v1579
    %v1581 = vpop.xlane.xlu0 %1580
    %v1582 = vsel %vm117, %v1578, 0.0
    %1583 = vadd.xlane.f32.xlu0 %v1582
    %v1584 = vpop.xlane.xlu0 %1583
    %v1585 = vmul.f32 %v1581, %v1383
    %v1586 = vmul.f32 %v1584, %v1383
    %v1587 = vadd.f32 %v1585, 1e-05
    %v1588 = vadd.f32 %v1586, 1e-05
    %v1589 = vrsqrt.pop %v1587
    %v1590 = vrsqrt.pop %v1588
    %v1591 = vmul.f32 %v1575, %v1589
    %v1592 = vmul.f32 %v1576, %v1590
    %v1593 = vlaneseq
    %v1594 = vshrl.u32 %v1593, 7
    %v1595 = vsub.s32 6, %v1594
    %v1596 = vrot.slane %v46, %v1595
    %v1597 = vmul.f32 %v1591, %v1596
    %v1598 = vmul.f32 %v1592, %v1596
    %v1599 = vlaneseq
    %v1600 = vshrl.u32 %v1599, 7
    %v1601 = vsub.s32 7, %v1600
    %v1602 = vrot.slane %v46, %v1601
    %v1603 = vadd.f32 %v1597, %v1602
    %v1604 = vadd.f32 %v1598, %v1602
    %1605 = vst.msk [vmem:[#allocation2] sm:$0xff] %vm117, %v1603
    %s1606 = scalar_lea.vmem [#allocation2], 8
    %1607 = vst.msk [vmem:[%s1606] sm:$0xff] %vm117, %v1604
    // Predicated region
    $region54: #{tpu_custom_call.1} parent=1 // pred_check
      _
    $region55: #{tpu_custom_call.1} parent=1 // pred_check_branch
      %1609 = sbr.rel (0) target = $region57
    $region56: #{tpu_custom_call.1} parent=1 // pred_region
      %s1611 = ssub.s32 256, 256
      %1612 = vsyncadd [#allocation3], %s1611
      %s1613 = sshll.u32 [#allocation2], 4
      %s1614 = int_to_ptr.vmem [resolvable:$true] %s1613
      %1619 = dma.vmem_to_hbm [thread:$0]  %s1614, 256, %s13, [#allocation3], 128, 128, 8
    $region57: #{tpu_custom_call.1} parent=1 // pred_fallthru
      _
    // Predicated region
    $region58: #{tpu_custom_call.1} parent=1 // pred_check
      _
    $region59: #{tpu_custom_call.1} parent=1 // pred_check_branch
      %1621 = sbr.rel (0) target = $region61
    $region60: #{tpu_custom_call.1} parent=1 // pred_region
      %1622 = dma.done [#allocation3], 256
    $region61: #{tpu_custom_call.1} parent=1 // pred_fallthru
      _
    %1623 = vsyncpa [#allocation3], 1

</llo_original>
